<compile_context>
chip_gen: v6e
topology: v6e:2x2x1
jax: 0.10.0
libtpu: 0.0.40
codegen_flags: <defaults>
</compile_context>

<pallas_src>
import functools
import math

import jax
import jax.numpy as jnp
from jax.experimental import pallas as pl
from jax.experimental.pallas import tpu as pltpu


def fused_encoder_kernel(x_ref, mask_ref,
                         wq_ref, bq_ref, wk_ref, bk_ref, wv_ref, bv_ref,
                         wo_ref, bo_ref, g1_ref, be1_ref,
                         wi_ref, bi_ref, w2_ref, b2_ref, g2_ref, be2_ref,
                         out_ref, *, head_num, head_size, kv_block, eps=1e-6):
    l = pl.program_id(1)

    # Layer 0 of this batch block: seed the bf16 VMEM-resident carry.  out_ref's
    # block index is constant along the 'arbitrary' layer axis, so it stays in
    # VMEM and acts as the cross-layer activation carry (no HBM round trips
    # between layers, half the resident bytes of an f32 carry).
    @pl.when(l == 0)
    def _():
        out_ref[...] = x_ref[...]

    Bb, S, D = out_ref.shape
    BS = Bb * S
    H, hs = head_num, head_size
    BH = Bb * H
    nkv = S // kv_block
    scale = 1.0 / math.sqrt(head_size)

    xb = out_ref[...].reshape(BS, D)            # bf16 carried activation
    x_f32 = xb.astype(jnp.float32)              # f32 copy for the residual path

    # --- QKV projections: [BS, D] x [D, D] MXU matmuls, bf16 in / f32 acc ---
    q = jnp.dot(xb, wq_ref[0], preferred_element_type=jnp.float32) + bq_ref[0]
    k = jnp.dot(xb, wk_ref[0], preferred_element_type=jnp.float32) + bk_ref[0]
    v = jnp.dot(xb, wv_ref[0], preferred_element_type=jnp.float32) + bv_ref[0]
    q = q * scale                               # fold 1/sqrt(hs) into q once

    def split_heads(t):                         # [BS, D] f32 -> [B*H, S, hs] bf16
        return (t.reshape(Bb, S, H, hs).transpose(0, 2, 1, 3)
                 .reshape(BH, S, hs).astype(jnp.bfloat16))

    qh, kh, vh = split_heads(q), split_heads(k), split_heads(v)

    # Additive key-padding bias, broadcast over heads once (hoisted out of the
    # KV loop — JAX does not CSE broadcast_in_dim).
    mask_bh = jnp.broadcast_to(mask_ref[...][:, None, :, :],
                               (Bb, H, 1, S)).reshape(BH, 1, S)

    # --- attention for ALL heads at once (merged B*H batch dim), KV-blocked
    #     online softmax so the score/prob tile is [B*H, S, kv_block] instead
    #     of a full [B, S, S] f32 materialization ---
    m_i = jnp.full((BH, S, 1), -jnp.inf, jnp.float32)
    l_i = jnp.zeros((BH, S, 1), jnp.float32)
    acc = jnp.zeros((BH, S, hs), jnp.float32)
    # TODO(synk): at real seq lengths run the KV blocks as a lax.fori_loop (or a
    #             dedicated grid axis) instead of a static unroll.
    for j in range(nkv):
        ks = kh[:, j * kv_block:(j + 1) * kv_block, :]
        vs = vh[:, j * kv_block:(j + 1) * kv_block, :]
        s = jnp.einsum('bqd,bkd->bqk', qh, ks,
                       preferred_element_type=jnp.float32)        # [BH,S,kv]
        s = s + mask_bh[:, :, j * kv_block:(j + 1) * kv_block]
        m_new = jnp.maximum(m_i, jnp.max(s, axis=-1, keepdims=True))
        alpha = jnp.exp(m_i - m_new)
        p = jnp.exp(s - m_new)
        l_i = alpha * l_i + jnp.sum(p, axis=-1, keepdims=True)
        acc = alpha * acc + jnp.einsum('bqk,bkd->bqd',
                                       p.astype(jnp.bfloat16), vs,
                                       preferred_element_type=jnp.float32)
        m_i = m_new

    ctx = acc * pl.reciprocal(l_i, approx=True)                   # [BH,S,hs]
    ctx2 = (ctx.reshape(Bb, H, S, hs).transpose(0, 2, 1, 3)
               .reshape(BS, D).astype(jnp.bfloat16))

    # --- single K=D output projection (replaces H per-head K=hs accumulations) ---
    attn = jnp.dot(ctx2, wo_ref[0],
                   preferred_element_type=jnp.float32) + bo_ref[0]

    # --- residual + LayerNorm 1 (post-LN, BERT style), stats in f32 ---
    h1 = x_f32 + attn
    mu = jnp.mean(h1, axis=-1, keepdims=True)
    var = jnp.mean((h1 - mu) ** 2, axis=-1, keepdims=True)
    h1n = (h1 - mu) * jax.lax.rsqrt(var + eps) * g1_ref[0] + be1_ref[0]

    # --- FFN with FT-style tanh GELU (elementwise kept in f32; v5e has no bf16
    #     VPU/EUP).  TODO(synk): bf16 elementwise path on v6e/v7x. ---
    inter = jnp.dot(h1n.astype(jnp.bfloat16), wi_ref[0],
                    preferred_element_type=jnp.float32) + bi_ref[0]
    inter = 0.5 * inter * (1.0 + jnp.tanh(
        0.7978845608028654 * (inter + 0.044715 * inter * inter * inter)))
    ffn = jnp.dot(inter.astype(jnp.bfloat16), w2_ref[0],
                  preferred_element_type=jnp.float32) + b2_ref[0]
    # TODO(synk): for BERT-size D/4D, stream wi/w2 in K/N tiles so only a few MB
    #             of FFN weights are resident at a time (v7x 64 MiB VMEM).

    # --- residual + LayerNorm 2 ---
    h2 = h1n + ffn
    mu2 = jnp.mean(h2, axis=-1, keepdims=True)
    var2 = jnp.mean((h2 - mu2) ** 2, axis=-1, keepdims=True)
    out = (h2 - mu2) * jax.lax.rsqrt(var2 + eps) * g2_ref[0] + be2_ref[0]

    # Store the next layer's carry (bf16).  HBM writeback only happens when the
    # batch-block index advances, i.e. after the last layer.
    out_ref[...] = out.astype(jnp.bfloat16).reshape(Bb, S, D)


def custom_encoder_forward(inputs, lengths, stacked_params, *, head_num,
                           head_size, batch_block=1, kv_block=None):
    """Mirrors CustomEncoder.forward with embedding=None:
       hidden_states = encoders.forward(inputs, lengths)."""
    B, S, D = inputs.shape
    L = stacked_params[0].shape[0]
    assert B % batch_block == 0
    if kv_block is None:
        kv_block = min(S, 512)
    assert S % kv_block == 0

    # key-padding mask bias derived from `lengths` (additive, pre-softmax)
    pos = jnp.arange(S, dtype=jnp.int32)
    mask_bias = jnp.where(pos[None, :] < lengths[:, None], 0.0, -1e9)
    mask_bias = mask_bias.reshape(B, 1, S).astype(jnp.float32)

    def layer_spec(arr):
        nd = arr.ndim
        return pl.BlockSpec((1,) + arr.shape[1:],
                            lambda b, l, _nd=nd: (l,) + (0,) * (_nd - 1))

    in_specs = [
        pl.BlockSpec((batch_block, S, D), lambda b, l: (b, 0, 0)),   # x (bf16)
        pl.BlockSpec((batch_block, 1, S), lambda b, l: (b, 0, 0)),   # mask bias
    ] + [layer_spec(p) for p in stacked_params]

    kernel = functools.partial(fused_encoder_kernel, head_num=head_num,
                               head_size=head_size, kv_block=kv_block)
    out_bf16 = pl.pallas_call(
        kernel,
        out_shape=jax.ShapeDtypeStruct((B, S, D), jnp.bfloat16),
        grid=(B // batch_block, L),
        in_specs=in_specs,
        out_specs=pl.BlockSpec((batch_block, S, D), lambda b, l: (b, 0, 0)),
        compiler_params=pltpu.CompilerParams(
            dimension_semantics=("parallel", "arbitrary"),
            vmem_limit_bytes=48 * 1024 * 1024),
    )(inputs.astype(jnp.bfloat16), mask_bias, *stacked_params)
    # TODO(synk): remove_padding=True compaction path of the FT custom op is not
    #             reproduced; padded rows are simply computed and left in place.
    return out_bf16.astype(jnp.float32)


def make_layer_params(key, hidden, inter):
    ks = jax.random.split(key, 6)
    s = 0.02
    f32, bf16 = jnp.float32, jnp.bfloat16
    wq = (s * jax.random.normal(ks[0], (hidden, hidden), f32)).astype(bf16)
    wk = (s * jax.random.normal(ks[1], (hidden, hidden), f32)).astype(bf16)
    wv = (s * jax.random.normal(ks[2], (hidden, hidden), f32)).astype(bf16)
    wo = (s * jax.random.normal(ks[3], (hidden, hidden), f32)).astype(bf16)
    wi = (s * jax.random.normal(ks[4], (hidden, inter), f32)).astype(bf16)
    w2 = (s * jax.random.normal(ks[5], (inter, hidden), f32)).astype(bf16)
    bq = jnp.zeros((1, hidden), f32)
    bk = jnp.zeros((1, hidden), f32)
    bv = jnp.zeros((1, hidden), f32)
    bo = jnp.zeros((1, hidden), f32)
    g1 = jnp.ones((1, hidden), f32)
    be1 = jnp.zeros((1, hidden), f32)
    bi = jnp.zeros((1, inter), f32)
    b2 = jnp.zeros((1, hidden), f32)
    g2 = jnp.ones((1, hidden), f32)
    be2 = jnp.zeros((1, hidden), f32)
    return (wq, bq, wk, bk, wv, bv, wo, bo, g1, be1, wi, bi, w2, b2, g2, be2)


def make_stacked_params(key, layer_num, hidden, inter):
    keys = jax.random.split(key, layer_num)
    per_layer = [make_layer_params(k, hidden, inter) for k in keys]
    n = len(per_layer[0])
    return tuple(jnp.stack([lp[i] for lp in per_layer], axis=0) for i in range(n))


if __name__ == "__main__":
    layer_num = 2
    head_num = 2
    head_size = 16
    hidden = head_num * head_size          # 32
    inter = 4 * head_num * head_size       # 128
    B, S = 2, 8

    root = jax.random.PRNGKey(0)
    k_in, k_w = jax.random.split(root)

    inputs = jax.random.normal(k_in, (B, S, hidden), jnp.float32)
    lengths = jnp.array([8, 5], dtype=jnp.int32)
    params = make_stacked_params(k_w, layer_num, hidden, inter)

    # kv_block=4 (< S) so the online-softmax KV blocking is actually exercised.
    out = custom_encoder_forward(inputs, lengths, params,
                                 head_num=head_num, head_size=head_size,
                                 batch_block=1, kv_block=4)
    jax.block_until_ready(out)
    assert out.shape == (B, S, hidden)
    assert bool(jnp.all(jnp.isfinite(out)))
    print("KERNEL_OK")
</pallas_src>

<mosaic_0001>
module attributes {stable_mosaic.version = 11 : i64} {
  func.func @fused_encoder_kernel(%arg0: i32, %arg1: i32, %arg2: memref<1x8x32xbf16, #tpu.memory_space<vmem>>, %arg3: memref<1x1x8xf32, #tpu.memory_space<vmem>>, %arg4: memref<1x32x32xbf16, #tpu.memory_space<vmem>>, %arg5: memref<1x1x32xf32, #tpu.memory_space<vmem>>, %arg6: memref<1x32x32xbf16, #tpu.memory_space<vmem>>, %arg7: memref<1x1x32xf32, #tpu.memory_space<vmem>>, %arg8: memref<1x32x32xbf16, #tpu.memory_space<vmem>>, %arg9: memref<1x1x32xf32, #tpu.memory_space<vmem>>, %arg10: memref<1x32x32xbf16, #tpu.memory_space<vmem>>, %arg11: memref<1x1x32xf32, #tpu.memory_space<vmem>>, %arg12: memref<1x1x32xf32, #tpu.memory_space<vmem>>, %arg13: memref<1x1x32xf32, #tpu.memory_space<vmem>>, %arg14: memref<1x32x128xbf16, #tpu.memory_space<vmem>>, %arg15: memref<1x1x128xf32, #tpu.memory_space<vmem>>, %arg16: memref<1x128x32xbf16, #tpu.memory_space<vmem>>, %arg17: memref<1x1x32xf32, #tpu.memory_space<vmem>>, %arg18: memref<1x1x32xf32, #tpu.memory_space<vmem>>, %arg19: memref<1x1x32xf32, #tpu.memory_space<vmem>>, %arg20: memref<1x8x32xbf16, #tpu.memory_space<vmem>>) attributes {dimension_semantics = [#tpu.dimension_semantics<parallel>, #tpu.dimension_semantics<arbitrary>], iteration_bounds = array<i64: 2, 2>, scalar_prefetch = 0 : i64, scratch_operands = 0 : i64, tpu.core_type = #tpu.core_type<tc>, window_params = [{transform_indices = @transform_0, window_bounds = array<i64: 1, 8, 32>}, {transform_indices = @transform_1, window_bounds = array<i64: 1, 1, 8>}, {transform_indices = @transform_2, window_bounds = array<i64: 1, 32, 32>}, {transform_indices = @transform_3, window_bounds = array<i64: 1, 1, 32>}, {transform_indices = @transform_4, window_bounds = array<i64: 1, 32, 32>}, {transform_indices = @transform_5, window_bounds = array<i64: 1, 1, 32>}, {transform_indices = @transform_6, window_bounds = array<i64: 1, 32, 32>}, {transform_indices = @transform_7, window_bounds = array<i64: 1, 1, 32>}, {transform_indices = @transform_8, window_bounds = array<i64: 1, 32, 32>}, {transform_indices = @transform_9, window_bounds = array<i64: 1, 1, 32>}, {transform_indices = @transform_10, window_bounds = array<i64: 1, 1, 32>}, {transform_indices = @transform_11, window_bounds = array<i64: 1, 1, 32>}, {transform_indices = @transform_12, window_bounds = array<i64: 1, 32, 128>}, {transform_indices = @transform_13, window_bounds = array<i64: 1, 1, 128>}, {transform_indices = @transform_14, window_bounds = array<i64: 1, 128, 32>}, {transform_indices = @transform_15, window_bounds = array<i64: 1, 1, 32>}, {transform_indices = @transform_16, window_bounds = array<i64: 1, 1, 32>}, {transform_indices = @transform_17, window_bounds = array<i64: 1, 1, 32>}, {transform_indices = @transform_18, window_bounds = array<i64: 1, 8, 32>}]} {
    %c0_i32 = arith.constant 0 : i32
    %0 = arith.cmpi eq, %arg1, %c0_i32 : i32
    %1 = arith.extui %0 : i1 to i32
    %c0_i32_0 = arith.constant 0 : i32
    %2 = arith.cmpi ne, %1, %c0_i32_0 : i32
    scf.if %2 {
      %c0_88 = arith.constant 0 : index
      %c0_89 = arith.constant 0 : index
      %c0_90 = arith.constant 0 : index
      %195 = vector.load %arg2[%c0_88, %c0_89, %c0_90] : memref<1x8x32xbf16, #tpu.memory_space<vmem>>, vector<1x8x32xbf16>
      %c0_91 = arith.constant 0 : index
      %c0_92 = arith.constant 0 : index
      %c0_93 = arith.constant 0 : index
      %196 = vector.load %arg20[%c0_91, %c0_92, %c0_93] : memref<1x8x32xbf16, #tpu.memory_space<vmem>>, vector<1x8x32xbf16>
      tpu.vector_store %arg20[%c0_91, %c0_92, %c0_93], %195 {strides = array<i32>} : memref<1x8x32xbf16, #tpu.memory_space<vmem>>, vector<1x8x32xbf16>,
    } else {
    }
    %c0 = arith.constant 0 : index
    %c0_1 = arith.constant 0 : index
    %c0_2 = arith.constant 0 : index
    %3 = vector.load %arg20[%c0, %c0_1, %c0_2] : memref<1x8x32xbf16, #tpu.memory_space<vmem>>, vector<1x8x32xbf16>
    %4 = vector.shape_cast %3 : vector<1x8x32xbf16> to vector<8x32xbf16>
    %5 = arith.extf %4 : vector<8x32xbf16> to vector<8x32xf32>
    %c0_3 = arith.constant 0 : index
    %c0_4 = arith.constant 0 : index
    %c0_5 = arith.constant 0 : index
    %6 = vector.load %arg4[%c0_3, %c0_4, %c0_5] : memref<1x32x32xbf16, #tpu.memory_space<vmem>>, vector<1x32x32xbf16>
    %7 = vector.shape_cast %6 : vector<1x32x32xbf16> to vector<32x32xbf16>
    %cst = arith.constant dense<0.000000e+00> : vector<8x32xf32>
    %8 = tpu.matmul %4, %7, %cst {dimension_numbers = #tpu.dot_dimension_numbers<[1], [0], [0], [1], [0, 0, 1, 1], [], []>} : vector<8x32xbf16>, vector<32x32xbf16>, vector<8x32xf32> -> vector<8x32xf32>
    %c0_6 = arith.constant 0 : index
    %c0_7 = arith.constant 0 : index
    %c0_8 = arith.constant 0 : index
    %9 = vector.load %arg5[%c0_6, %c0_7, %c0_8] : memref<1x1x32xf32, #tpu.memory_space<vmem>>, vector<1x1x32xf32>
    %10 = vector.shape_cast %9 : vector<1x1x32xf32> to vector<1x32xf32>
    %11 = vector.broadcast %10 : vector<1x32xf32> to vector<8x32xf32>
    %12 = arith.addf %8, %11 : vector<8x32xf32>
    %c0_9 = arith.constant 0 : index
    %c0_10 = arith.constant 0 : index
    %c0_11 = arith.constant 0 : index
    %13 = vector.load %arg6[%c0_9, %c0_10, %c0_11] : memref<1x32x32xbf16, #tpu.memory_space<vmem>>, vector<1x32x32xbf16>
    %14 = vector.shape_cast %13 : vector<1x32x32xbf16> to vector<32x32xbf16>
    %cst_12 = arith.constant dense<0.000000e+00> : vector<8x32xf32>
    %15 = tpu.matmul %4, %14, %cst_12 {dimension_numbers = #tpu.dot_dimension_numbers<[1], [0], [0], [1], [0, 0, 1, 1], [], []>} : vector<8x32xbf16>, vector<32x32xbf16>, vector<8x32xf32> -> vector<8x32xf32>
    %c0_13 = arith.constant 0 : index
    %c0_14 = arith.constant 0 : index
    %c0_15 = arith.constant 0 : index
    %16 = vector.load %arg7[%c0_13, %c0_14, %c0_15] : memref<1x1x32xf32, #tpu.memory_space<vmem>>, vector<1x1x32xf32>
    %17 = vector.shape_cast %16 : vector<1x1x32xf32> to vector<1x32xf32>
    %18 = vector.broadcast %17 : vector<1x32xf32> to vector<8x32xf32>
    %19 = arith.addf %15, %18 : vector<8x32xf32>
    %c0_16 = arith.constant 0 : index
    %c0_17 = arith.constant 0 : index
    %c0_18 = arith.constant 0 : index
    %20 = vector.load %arg8[%c0_16, %c0_17, %c0_18] : memref<1x32x32xbf16, #tpu.memory_space<vmem>>, vector<1x32x32xbf16>
    %21 = vector.shape_cast %20 : vector<1x32x32xbf16> to vector<32x32xbf16>
    %cst_19 = arith.constant dense<0.000000e+00> : vector<8x32xf32>
    %22 = tpu.matmul %4, %21, %cst_19 {dimension_numbers = #tpu.dot_dimension_numbers<[1], [0], [0], [1], [0, 0, 1, 1], [], []>} : vector<8x32xbf16>, vector<32x32xbf16>, vector<8x32xf32> -> vector<8x32xf32>
    %c0_20 = arith.constant 0 : index
    %c0_21 = arith.constant 0 : index
    %c0_22 = arith.constant 0 : index
    %23 = vector.load %arg9[%c0_20, %c0_21, %c0_22] : memref<1x1x32xf32, #tpu.memory_space<vmem>>, vector<1x1x32xf32>
    %24 = vector.shape_cast %23 : vector<1x1x32xf32> to vector<1x32xf32>
    %25 = vector.broadcast %24 : vector<1x32xf32> to vector<8x32xf32>
    %26 = arith.addf %22, %25 : vector<8x32xf32>
    %cst_23 = arith.constant 2.500000e-01 : f32
    %27 = vector.broadcast %cst_23 : f32 to vector<8x32xf32>
    %28 = arith.mulf %12, %27 : vector<8x32xf32>
    %29 = vector.shape_cast %28 : vector<8x32xf32> to vector<1x8x2x16xf32>
    %30 = tpu.transpose %29, [0, 2, 1, 3] : vector<1x8x2x16xf32> -> vector<1x2x8x16xf32>
    %31 = vector.shape_cast %30 : vector<1x2x8x16xf32> to vector<2x8x16xf32>
    %32 = arith.truncf %31 : vector<2x8x16xf32> to vector<2x8x16xbf16>
    %33 = vector.shape_cast %19 : vector<8x32xf32> to vector<1x8x2x16xf32>
    %34 = tpu.transpose %33, [0, 2, 1, 3] : vector<1x8x2x16xf32> -> vector<1x2x8x16xf32>
    %35 = vector.shape_cast %34 : vector<1x2x8x16xf32> to vector<2x8x16xf32>
    %36 = arith.truncf %35 : vector<2x8x16xf32> to vector<2x8x16xbf16>
    %37 = vector.shape_cast %26 : vector<8x32xf32> to vector<1x8x2x16xf32>
    %38 = tpu.transpose %37, [0, 2, 1, 3] : vector<1x8x2x16xf32> -> vector<1x2x8x16xf32>
    %39 = vector.shape_cast %38 : vector<1x2x8x16xf32> to vector<2x8x16xf32>
    %40 = arith.truncf %39 : vector<2x8x16xf32> to vector<2x8x16xbf16>
    %c0_24 = arith.constant 0 : index
    %c0_25 = arith.constant 0 : index
    %c0_26 = arith.constant 0 : index
    %41 = vector.load %arg3[%c0_24, %c0_25, %c0_26] : memref<1x1x8xf32, #tpu.memory_space<vmem>>, vector<1x1x8xf32>
    %42 = vector.shape_cast %41 : vector<1x1x8xf32> to vector<1x1x1x8xf32>
    %43 = vector.shape_cast %42 : vector<1x1x1x8xf32> to vector<1x1x1x8xf32>
    %44 = vector.broadcast %43 : vector<1x1x1x8xf32> to vector<1x2x1x8xf32>
    %45 = vector.shape_cast %44 : vector<1x2x1x8xf32> to vector<2x1x8xf32>
    %cst_27 = arith.constant 0xFF800000 : f32
    %46 = vector.broadcast %cst_27 : f32 to vector<2x8x1xf32>
    %cst_28 = arith.constant 0.000000e+00 : f32
    %47 = vector.broadcast %cst_28 : f32 to vector<2x8x1xf32>
    %cst_29 = arith.constant 0.000000e+00 : f32
    %48 = vector.broadcast %cst_29 : f32 to vector<2x8x16xf32>
    %49 = vector.extract_strided_slice %36 {offsets = [0, 0, 0], sizes = [2, 4, 16], strides = [1, 1, 1]} : vector<2x8x16xbf16> to vector<2x4x16xbf16>
    %50 = vector.extract_strided_slice %40 {offsets = [0, 0, 0], sizes = [2, 4, 16], strides = [1, 1, 1]} : vector<2x8x16xbf16> to vector<2x4x16xbf16>
    "tpu.trace_start"() <{level = 10 : i32, message = "bqd,bkd->bqk"}> : () -> ()
    %cst_30 = arith.constant dense<0.000000e+00> : vector<2x8x4xf32>
    %51 = tpu.matmul %32, %49, %cst_30 {dimension_numbers = #tpu.dot_dimension_numbers<[2], [2], [1], [1], [0, 0, 0, 1, 1, 1], [0], [0]>} : vector<2x8x16xbf16>, vector<2x4x16xbf16>, vector<2x8x4xf32> -> vector<2x8x4xf32>
    "tpu.trace_stop"() : () -> ()
    %52 = vector.extract_strided_slice %45 {offsets = [0, 0, 0], sizes = [2, 1, 4], strides = [1, 1, 1]} : vector<2x1x8xf32> to vector<2x1x4xf32>
    %53 = vector.broadcast %52 : vector<2x1x4xf32> to vector<2x8x4xf32>
    %54 = arith.addf %51, %53 : vector<2x8x4xf32>
    %cst_31 = arith.constant dense<0xFF800000> : vector<2x8xf32>
    %55 = vector.multi_reduction <maximumf>, %54, %cst_31 [2] : vector<2x8x4xf32> to vector<2x8xf32>
    %56 = vector.shape_cast %55 : vector<2x8xf32> to vector<2x8x1xf32>
    %57 = arith.maximumf %46, %56 : vector<2x8x1xf32>
    %58 = arith.subf %46, %57 : vector<2x8x1xf32>
    %59 = math.exp %58 : vector<2x8x1xf32>
    %60 = vector.broadcast %57 : vector<2x8x1xf32> to vector<2x8x4xf32>
    %61 = arith.subf %54, %60 : vector<2x8x4xf32>
    %62 = math.exp %61 : vector<2x8x4xf32>
    %63 = arith.mulf %59, %47 : vector<2x8x1xf32>
    %cst_32 = arith.constant dense<0.000000e+00> : vector<2x8xf32>
    %64 = vector.multi_reduction <add>, %62, %cst_32 [2] : vector<2x8x4xf32> to vector<2x8xf32>
    %65 = vector.shape_cast %64 : vector<2x8xf32> to vector<2x8x1xf32>
    %66 = arith.addf %63, %65 : vector<2x8x1xf32>
    %67 = vector.broadcast %59 : vector<2x8x1xf32> to vector<2x8x16xf32>
    %68 = arith.mulf %67, %48 : vector<2x8x16xf32>
    %69 = arith.truncf %62 : vector<2x8x4xf32> to vector<2x8x4xbf16>
    "tpu.trace_start"() <{level = 10 : i32, message = "bqk,bkd->bqd"}> : () -> ()
    %cst_33 = arith.constant dense<0.000000e+00> : vector<2x8x16xf32>
    %70 = tpu.matmul %69, %50, %cst_33 {dimension_numbers = #tpu.dot_dimension_numbers<[2], [1], [1], [2], [0, 0, 0, 1, 1, 2], [0], [0]>} : vector<2x8x4xbf16>, vector<2x4x16xbf16>, vector<2x8x16xf32> -> vector<2x8x16xf32>
    "tpu.trace_stop"() : () -> ()
    %71 = arith.addf %68, %70 : vector<2x8x16xf32>
    %72 = vector.extract_strided_slice %36 {offsets = [0, 4, 0], sizes = [2, 4, 16], strides = [1, 1, 1]} : vector<2x8x16xbf16> to vector<2x4x16xbf16>
    %73 = vector.extract_strided_slice %40 {offsets = [0, 4, 0], sizes = [2, 4, 16], strides = [1, 1, 1]} : vector<2x8x16xbf16> to vector<2x4x16xbf16>
    "tpu.trace_start"() <{level = 10 : i32, message = "bqd,bkd->bqk"}> : () -> ()
    %cst_34 = arith.constant dense<0.000000e+00> : vector<2x8x4xf32>
    %74 = tpu.matmul %32, %72, %cst_34 {dimension_numbers = #tpu.dot_dimension_numbers<[2], [2], [1], [1], [0, 0, 0, 1, 1, 1], [0], [0]>} : vector<2x8x16xbf16>, vector<2x4x16xbf16>, vector<2x8x4xf32> -> vector<2x8x4xf32>
    "tpu.trace_stop"() : () -> ()
    %75 = vector.extract_strided_slice %45 {offsets = [0, 0, 4], sizes = [2, 1, 4], strides = [1, 1, 1]} : vector<2x1x8xf32> to vector<2x1x4xf32>
    %76 = vector.broadcast %75 : vector<2x1x4xf32> to vector<2x8x4xf32>
    %77 = arith.addf %74, %76 : vector<2x8x4xf32>
    %cst_35 = arith.constant dense<0xFF800000> : vector<2x8xf32>
    %78 = vector.multi_reduction <maximumf>, %77, %cst_35 [2] : vector<2x8x4xf32> to vector<2x8xf32>
    %79 = vector.shape_cast %78 : vector<2x8xf32> to vector<2x8x1xf32>
    %80 = arith.maximumf %57, %79 : vector<2x8x1xf32>
    %81 = arith.subf %57, %80 : vector<2x8x1xf32>
    %82 = math.exp %81 : vector<2x8x1xf32>
    %83 = vector.broadcast %80 : vector<2x8x1xf32> to vector<2x8x4xf32>
    %84 = arith.subf %77, %83 : vector<2x8x4xf32>
    %85 = math.exp %84 : vector<2x8x4xf32>
    %86 = arith.mulf %82, %66 : vector<2x8x1xf32>
    %cst_36 = arith.constant dense<0.000000e+00> : vector<2x8xf32>
    %87 = vector.multi_reduction <add>, %85, %cst_36 [2] : vector<2x8x4xf32> to vector<2x8xf32>
    %88 = vector.shape_cast %87 : vector<2x8xf32> to vector<2x8x1xf32>
    %89 = arith.addf %86, %88 : vector<2x8x1xf32>
    %90 = vector.broadcast %82 : vector<2x8x1xf32> to vector<2x8x16xf32>
    %91 = arith.mulf %90, %71 : vector<2x8x16xf32>
    %92 = arith.truncf %85 : vector<2x8x4xf32> to vector<2x8x4xbf16>
    "tpu.trace_start"() <{level = 10 : i32, message = "bqk,bkd->bqd"}> : () -> ()
    %cst_37 = arith.constant dense<0.000000e+00> : vector<2x8x16xf32>
    %93 = tpu.matmul %92, %73, %cst_37 {dimension_numbers = #tpu.dot_dimension_numbers<[2], [1], [1], [2], [0, 0, 0, 1, 1, 2], [0], [0]>} : vector<2x8x4xbf16>, vector<2x4x16xbf16>, vector<2x8x16xf32> -> vector<2x8x16xf32>
    "tpu.trace_stop"() : () -> ()
    %94 = arith.addf %91, %93 : vector<2x8x16xf32>
    %95 = tpu.reciprocal %89 {approx = true} : vector<2x8x1xf32> -> vector<2x8x1xf32>
    %96 = vector.broadcast %95 : vector<2x8x1xf32> to vector<2x8x16xf32>
    %97 = arith.mulf %94, %96 : vector<2x8x16xf32>
    %98 = vector.shape_cast %97 : vector<2x8x16xf32> to vector<1x2x8x16xf32>
    %99 = tpu.transpose %98, [0, 2, 1, 3] : vector<1x2x8x16xf32> -> vector<1x8x2x16xf32>
    %100 = vector.shape_cast %99 : vector<1x8x2x16xf32> to vector<8x32xf32>
    %101 = arith.truncf %100 : vector<8x32xf32> to vector<8x32xbf16>
    %c0_38 = arith.constant 0 : index
    %c0_39 = arith.constant 0 : index
    %c0_40 = arith.constant 0 : index
    %102 = vector.load %arg10[%c0_38, %c0_39, %c0_40] : memref<1x32x32xbf16, #tpu.memory_space<vmem>>, vector<1x32x32xbf16>
    %103 = vector.shape_cast %102 : vector<1x32x32xbf16> to vector<32x32xbf16>
    %cst_41 = arith.constant dense<0.000000e+00> : vector<8x32xf32>
    %104 = tpu.matmul %101, %103, %cst_41 {dimension_numbers = #tpu.dot_dimension_numbers<[1], [0], [0], [1], [0, 0, 1, 1], [], []>} : vector<8x32xbf16>, vector<32x32xbf16>, vector<8x32xf32> -> vector<8x32xf32>
    %c0_42 = arith.constant 0 : index
    %c0_43 = arith.constant 0 : index
    %c0_44 = arith.constant 0 : index
    %105 = vector.load %arg11[%c0_42, %c0_43, %c0_44] : memref<1x1x32xf32, #tpu.memory_space<vmem>>, vector<1x1x32xf32>
    %106 = vector.shape_cast %105 : vector<1x1x32xf32> to vector<1x32xf32>
    %107 = vector.broadcast %106 : vector<1x32xf32> to vector<8x32xf32>
    %108 = arith.addf %104, %107 : vector<8x32xf32>
    %109 = arith.addf %5, %108 : vector<8x32xf32>
    %cst_45 = arith.constant dense<0.000000e+00> : vector<8xf32>
    %110 = vector.multi_reduction <add>, %109, %cst_45 [1] : vector<8x32xf32> to vector<8xf32>
    %111 = vector.shape_cast %110 : vector<8xf32> to vector<8x1xf32>
    %cst_46 = arith.constant 3.200000e+01 : f32
    %112 = vector.broadcast %cst_46 : f32 to vector<8x1xf32>
    %113 = arith.divf %111, %112 : vector<8x1xf32>
    %114 = vector.broadcast %113 : vector<8x1xf32> to vector<8x32xf32>
    %115 = arith.subf %109, %114 : vector<8x32xf32>
    %116 = arith.mulf %115, %115 : vector<8x32xf32>
    %cst_47 = arith.constant dense<0.000000e+00> : vector<8xf32>
    %117 = vector.multi_reduction <add>, %116, %cst_47 [1] : vector<8x32xf32> to vector<8xf32>
    %118 = vector.shape_cast %117 : vector<8xf32> to vector<8x1xf32>
    %cst_48 = arith.constant 3.200000e+01 : f32
    %119 = vector.broadcast %cst_48 : f32 to vector<8x1xf32>
    %120 = arith.divf %118, %119 : vector<8x1xf32>
    %121 = vector.broadcast %113 : vector<8x1xf32> to vector<8x32xf32>
    %122 = arith.subf %109, %121 : vector<8x32xf32>
    %cst_49 = arith.constant 9.99999997E-7 : f32
    %123 = vector.broadcast %cst_49 : f32 to vector<8x1xf32>
    %124 = arith.addf %120, %123 : vector<8x1xf32>
    %125 = math.rsqrt %124 : vector<8x1xf32>
    %126 = vector.broadcast %125 : vector<8x1xf32> to vector<8x32xf32>
    %127 = arith.mulf %122, %126 : vector<8x32xf32>
    %c0_50 = arith.constant 0 : index
    %c0_51 = arith.constant 0 : index
    %c0_52 = arith.constant 0 : index
    %128 = vector.load %arg12[%c0_50, %c0_51, %c0_52] : memref<1x1x32xf32, #tpu.memory_space<vmem>>, vector<1x1x32xf32>
    %129 = vector.shape_cast %128 : vector<1x1x32xf32> to vector<1x32xf32>
    %130 = vector.broadcast %129 : vector<1x32xf32> to vector<8x32xf32>
    %131 = arith.mulf %127, %130 : vector<8x32xf32>
    %c0_53 = arith.constant 0 : index
    %c0_54 = arith.constant 0 : index
    %c0_55 = arith.constant 0 : index
    %132 = vector.load %arg13[%c0_53, %c0_54, %c0_55] : memref<1x1x32xf32, #tpu.memory_space<vmem>>, vector<1x1x32xf32>
    %133 = vector.shape_cast %132 : vector<1x1x32xf32> to vector<1x32xf32>
    %134 = vector.broadcast %133 : vector<1x32xf32> to vector<8x32xf32>
    %135 = arith.addf %131, %134 : vector<8x32xf32>
    %136 = arith.truncf %135 : vector<8x32xf32> to vector<8x32xbf16>
    %c0_56 = arith.constant 0 : index
    %c0_57 = arith.constant 0 : index
    %c0_58 = arith.constant 0 : index
    %137 = vector.load %arg14[%c0_56, %c0_57, %c0_58] : memref<1x32x128xbf16, #tpu.memory_space<vmem>>, vector<1x32x128xbf16>
    %138 = vector.shape_cast %137 : vector<1x32x128xbf16> to vector<32x128xbf16>
    %cst_59 = arith.constant dense<0.000000e+00> : vector<8x128xf32>
    %139 = tpu.matmul %136, %138, %cst_59 {dimension_numbers = #tpu.dot_dimension_numbers<[1], [0], [0], [1], [0, 0, 1, 1], [], []>} : vector<8x32xbf16>, vector<32x128xbf16>, vector<8x128xf32> -> vector<8x128xf32>
    %c0_60 = arith.constant 0 : index
    %c0_61 = arith.constant 0 : index
    %c0_62 = arith.constant 0 : index
    %140 = vector.load %arg15[%c0_60, %c0_61, %c0_62] : memref<1x1x128xf32, #tpu.memory_space<vmem>>, vector<1x1x128xf32>
    %141 = vector.shape_cast %140 : vector<1x1x128xf32> to vector<1x128xf32>
    %142 = vector.broadcast %141 : vector<1x128xf32> to vector<8x128xf32>
    %143 = arith.addf %139, %142 : vector<8x128xf32>
    %cst_63 = arith.constant 5.000000e-01 : f32
    %144 = vector.broadcast %cst_63 : f32 to vector<8x128xf32>
    %145 = arith.mulf %144, %143 : vector<8x128xf32>
    %cst_64 = arith.constant 4.471500e-02 : f32
    %146 = vector.broadcast %cst_64 : f32 to vector<8x128xf32>
    %147 = arith.mulf %146, %143 : vector<8x128xf32>
    %148 = arith.mulf %147, %143 : vector<8x128xf32>
    %149 = arith.mulf %148, %143 : vector<8x128xf32>
    %150 = arith.addf %143, %149 : vector<8x128xf32>
    %cst_65 = arith.constant 0.797884583 : f32
    %151 = vector.broadcast %cst_65 : f32 to vector<8x128xf32>
    %152 = arith.mulf %151, %150 : vector<8x128xf32>
    %153 = math.tanh %152 : vector<8x128xf32>
    %cst_66 = arith.constant 1.000000e+00 : f32
    %154 = vector.broadcast %cst_66 : f32 to vector<8x128xf32>
    %155 = arith.addf %154, %153 : vector<8x128xf32>
    %156 = arith.mulf %145, %155 : vector<8x128xf32>
    %157 = arith.truncf %156 : vector<8x128xf32> to vector<8x128xbf16>
    %c0_67 = arith.constant 0 : index
    %c0_68 = arith.constant 0 : index
    %c0_69 = arith.constant 0 : index
    %158 = vector.load %arg16[%c0_67, %c0_68, %c0_69] : memref<1x128x32xbf16, #tpu.memory_space<vmem>>, vector<1x128x32xbf16>
    %159 = vector.shape_cast %158 : vector<1x128x32xbf16> to vector<128x32xbf16>
    %cst_70 = arith.constant dense<0.000000e+00> : vector<8x32xf32>
    %160 = tpu.matmul %157, %159, %cst_70 {dimension_numbers = #tpu.dot_dimension_numbers<[1], [0], [0], [1], [0, 0, 1, 1], [], []>} : vector<8x128xbf16>, vector<128x32xbf16>, vector<8x32xf32> -> vector<8x32xf32>
    %c0_71 = arith.constant 0 : index
    %c0_72 = arith.constant 0 : index
    %c0_73 = arith.constant 0 : index
    %161 = vector.load %arg17[%c0_71, %c0_72, %c0_73] : memref<1x1x32xf32, #tpu.memory_space<vmem>>, vector<1x1x32xf32>
    %162 = vector.shape_cast %161 : vector<1x1x32xf32> to vector<1x32xf32>
    %163 = vector.broadcast %162 : vector<1x32xf32> to vector<8x32xf32>
    %164 = arith.addf %160, %163 : vector<8x32xf32>
    %165 = arith.addf %135, %164 : vector<8x32xf32>
    %cst_74 = arith.constant dense<0.000000e+00> : vector<8xf32>
    %166 = vector.multi_reduction <add>, %165, %cst_74 [1] : vector<8x32xf32> to vector<8xf32>
    %167 = vector.shape_cast %166 : vector<8xf32> to vector<8x1xf32>
    %cst_75 = arith.constant 3.200000e+01 : f32
    %168 = vector.broadcast %cst_75 : f32 to vector<8x1xf32>
    %169 = arith.divf %167, %168 : vector<8x1xf32>
    %170 = vector.broadcast %169 : vector<8x1xf32> to vector<8x32xf32>
    %171 = arith.subf %165, %170 : vector<8x32xf32>
    %172 = arith.mulf %171, %171 : vector<8x32xf32>
    %cst_76 = arith.constant dense<0.000000e+00> : vector<8xf32>
    %173 = vector.multi_reduction <add>, %172, %cst_76 [1] : vector<8x32xf32> to vector<8xf32>
    %174 = vector.shape_cast %173 : vector<8xf32> to vector<8x1xf32>
    %cst_77 = arith.constant 3.200000e+01 : f32
    %175 = vector.broadcast %cst_77 : f32 to vector<8x1xf32>
    %176 = arith.divf %174, %175 : vector<8x1xf32>
    %177 = vector.broadcast %169 : vector<8x1xf32> to vector<8x32xf32>
    %178 = arith.subf %165, %177 : vector<8x32xf32>
    %cst_78 = arith.constant 9.99999997E-7 : f32
    %179 = vector.broadcast %cst_78 : f32 to vector<8x1xf32>
    %180 = arith.addf %176, %179 : vector<8x1xf32>
    %181 = math.rsqrt %180 : vector<8x1xf32>
    %182 = vector.broadcast %181 : vector<8x1xf32> to vector<8x32xf32>
    %183 = arith.mulf %178, %182 : vector<8x32xf32>
    %c0_79 = arith.constant 0 : index
    %c0_80 = arith.constant 0 : index
    %c0_81 = arith.constant 0 : index
    %184 = vector.load %arg18[%c0_79, %c0_80, %c0_81] : memref<1x1x32xf32, #tpu.memory_space<vmem>>, vector<1x1x32xf32>
    %185 = vector.shape_cast %184 : vector<1x1x32xf32> to vector<1x32xf32>
    %186 = vector.broadcast %185 : vector<1x32xf32> to vector<8x32xf32>
    %187 = arith.mulf %183, %186 : vector<8x32xf32>
    %c0_82 = arith.constant 0 : index
    %c0_83 = arith.constant 0 : index
    %c0_84 = arith.constant 0 : index
    %188 = vector.load %arg19[%c0_82, %c0_83, %c0_84] : memref<1x1x32xf32, #tpu.memory_space<vmem>>, vector<1x1x32xf32>
    %189 = vector.shape_cast %188 : vector<1x1x32xf32> to vector<1x32xf32>
    %190 = vector.broadcast %189 : vector<1x32xf32> to vector<8x32xf32>
    %191 = arith.addf %187, %190 : vector<8x32xf32>
    %192 = arith.truncf %191 : vector<8x32xf32> to vector<8x32xbf16>
    %193 = vector.shape_cast %192 : vector<8x32xbf16> to vector<1x8x32xbf16>
    %c0_85 = arith.constant 0 : index
    %c0_86 = arith.constant 0 : index
    %c0_87 = arith.constant 0 : index
    %194 = vector.load %arg20[%c0_85, %c0_86, %c0_87] : memref<1x8x32xbf16, #tpu.memory_space<vmem>>, vector<1x8x32xbf16>
    tpu.vector_store %arg20[%c0_85, %c0_86, %c0_87], %193 {strides = array<i32>} : memref<1x8x32xbf16, #tpu.memory_space<vmem>>, vector<1x8x32xbf16>,
    return
  }
  func.func @transform_0(%arg0: i32, %arg1: i32) -> (i32, i32, i32) {
    %c0_i32 = arith.constant 0 : i32
    %c0_i32_0 = arith.constant 0 : i32
    %c0_i32_1 = arith.constant 0 : i32
    return %arg0, %c0_i32, %c0_i32_0 : i32, i32, i32
  }
  func.func @transform_1(%arg0: i32, %arg1: i32) -> (i32, i32, i32) {
    %c0_i32 = arith.constant 0 : i32
    %c0_i32_0 = arith.constant 0 : i32
    %c0_i32_1 = arith.constant 0 : i32
    return %arg0, %c0_i32, %c0_i32_0 : i32, i32, i32
  }
  func.func @transform_2(%arg0: i32, %arg1: i32) -> (i32, i32, i32) {
    %c0_i32 = arith.constant 0 : i32
    %c0_i32_0 = arith.constant 0 : i32
    %c0_i32_1 = arith.constant 0 : i32
    return %arg1, %c0_i32, %c0_i32_0 : i32, i32, i32
  }
  func.func @transform_3(%arg0: i32, %arg1: i32) -> (i32, i32, i32) {
    %c0_i32 = arith.constant 0 : i32
    %c0_i32_0 = arith.constant 0 : i32
    %c0_i32_1 = arith.constant 0 : i32
    return %arg1, %c0_i32, %c0_i32_0 : i32, i32, i32
  }
  func.func @transform_4(%arg0: i32, %arg1: i32) -> (i32, i32, i32) {
    %c0_i32 = arith.constant 0 : i32
    %c0_i32_0 = arith.constant 0 : i32
    %c0_i32_1 = arith.constant 0 : i32
    return %arg1, %c0_i32, %c0_i32_0 : i32, i32, i32
  }
  func.func @transform_5(%arg0: i32, %arg1: i32) -> (i32, i32, i32) {
    %c0_i32 = arith.constant 0 : i32
    %c0_i32_0 = arith.constant 0 : i32
    %c0_i32_1 = arith.constant 0 : i32
    return %arg1, %c0_i32, %c0_i32_0 : i32, i32, i32
  }
  func.func @transform_6(%arg0: i32, %arg1: i32) -> (i32, i32, i32) {
    %c0_i32 = arith.constant 0 : i32
    %c0_i32_0 = arith.constant 0 : i32
    %c0_i32_1 = arith.constant 0 : i32
    return %arg1, %c0_i32, %c0_i32_0 : i32, i32, i32
  }
  func.func @transform_7(%arg0: i32, %arg1: i32) -> (i32, i32, i32) {
    %c0_i32 = arith.constant 0 : i32
    %c0_i32_0 = arith.constant 0 : i32
    %c0_i32_1 = arith.constant 0 : i32
    return %arg1, %c0_i32, %c0_i32_0 : i32, i32, i32
  }
  func.func @transform_8(%arg0: i32, %arg1: i32) -> (i32, i32, i32) {
    %c0_i32 = arith.constant 0 : i32
    %c0_i32_0 = arith.constant 0 : i32
    %c0_i32_1 = arith.constant 0 : i32
    return %arg1, %c0_i32, %c0_i32_0 : i32, i32, i32
  }
  func.func @transform_9(%arg0: i32, %arg1: i32) -> (i32, i32, i32) {
    %c0_i32 = arith.constant 0 : i32
    %c0_i32_0 = arith.constant 0 : i32
    %c0_i32_1 = arith.constant 0 : i32
    return %arg1, %c0_i32, %c0_i32_0 : i32, i32, i32
  }
  func.func @transform_10(%arg0: i32, %arg1: i32) -> (i32, i32, i32) {
    %c0_i32 = arith.constant 0 : i32
    %c0_i32_0 = arith.constant 0 : i32
    %c0_i32_1 = arith.constant 0 : i32
    return %arg1, %c0_i32, %c0_i32_0 : i32, i32, i32
  }
  func.func @transform_11(%arg0: i32, %arg1: i32) -> (i32, i32, i32) {
    %c0_i32 = arith.constant 0 : i32
    %c0_i32_0 = arith.constant 0 : i32
    %c0_i32_1 = arith.constant 0 : i32
    return %arg1, %c0_i32, %c0_i32_0 : i32, i32, i32
  }
  func.func @transform_12(%arg0: i32, %arg1: i32) -> (i32, i32, i32) {
    %c0_i32 = arith.constant 0 : i32
    %c0_i32_0 = arith.constant 0 : i32
    %c0_i32_1 = arith.constant 0 : i32
    return %arg1, %c0_i32, %c0_i32_0 : i32, i32, i32
  }
  func.func @transform_13(%arg0: i32, %arg1: i32) -> (i32, i32, i32) {
    %c0_i32 = arith.constant 0 : i32
    %c0_i32_0 = arith.constant 0 : i32
    %c0_i32_1 = arith.constant 0 : i32
    return %arg1, %c0_i32, %c0_i32_0 : i32, i32, i32
  }
  func.func @transform_14(%arg0: i32, %arg1: i32) -> (i32, i32, i32) {
    %c0_i32 = arith.constant 0 : i32
    %c0_i32_0 = arith.constant 0 : i32
    %c0_i32_1 = arith.constant 0 : i32
    return %arg1, %c0_i32, %c0_i32_0 : i32, i32, i32
  }
  func.func @transform_15(%arg0: i32, %arg1: i32) -> (i32, i32, i32) {
    %c0_i32 = arith.constant 0 : i32
    %c0_i32_0 = arith.constant 0 : i32
    %c0_i32_1 = arith.constant 0 : i32
    return %arg1, %c0_i32, %c0_i32_0 : i32, i32, i32
  }
  func.func @transform_16(%arg0: i32, %arg1: i32) -> (i32, i32, i32) {
    %c0_i32 = arith.constant 0 : i32
    %c0_i32_0 = arith.constant 0 : i32
    %c0_i32_1 = arith.constant 0 : i32
    return %arg1, %c0_i32, %c0_i32_0 : i32, i32, i32
  }
  func.func @transform_17(%arg0: i32, %arg1: i32) -> (i32, i32, i32) {
    %c0_i32 = arith.constant 0 : i32
    %c0_i32_0 = arith.constant 0 : i32
    %c0_i32_1 = arith.constant 0 : i32
    return %arg1, %c0_i32, %c0_i32_0 : i32, i32, i32
  }
  func.func @transform_18(%arg0: i32, %arg1: i32) -> (i32, i32, i32) {
    %c0_i32 = arith.constant 0 : i32
    %c0_i32_0 = arith.constant 0 : i32
    %c0_i32_1 = arith.constant 0 : i32
    return %arg0, %c0_i32, %c0_i32_0 : i32, i32, i32
  }
}

</mosaic_0001>

<llo_original>
// kernel: tpu_custom_call.1
$region0: #{tpu_custom_call.1}
  #allocation0 [shape = 'u32[]', space=smem, size = 0x4, offset = 0x4, fixed_abs, tag = 'smem constant byte address 0x4 - core index']
  #allocation1 [shape = 'u32[144,128]{1,0:T(1,128)}', space=vmem, size = 0x12000, scoped, tag = 'internal scratch']
  %s0 = inlined_call_operand.hbm [shape: bf16[2,8,32], index: 0, kind: input, shape index: {}]
  %s1 = inlined_call_operand.hbm [shape: f32[2,1,8], index: 1, kind: input, shape index: {}]
  %s2 = inlined_call_operand.vmem [shape: bf16[2,32,32], index: 2, kind: input, shape index: {}]
  %s3 = inlined_call_operand.vmem [shape: f32[2,1,32], index: 3, kind: input, shape index: {}]
  %s4 = inlined_call_operand.vmem [shape: bf16[2,32,32], index: 4, kind: input, shape index: {}]
  %s5 = inlined_call_operand.vmem [shape: f32[2,1,32], index: 5, kind: input, shape index: {}]
  %s6 = inlined_call_operand.vmem [shape: bf16[2,32,32], index: 6, kind: input, shape index: {}]
  %s7 = inlined_call_operand.vmem [shape: f32[2,1,32], index: 7, kind: input, shape index: {}]
  %s8 = inlined_call_operand.vmem [shape: bf16[2,32,32], index: 8, kind: input, shape index: {}]
  %s9 = inlined_call_operand.vmem [shape: f32[2,1,32], index: 9, kind: input, shape index: {}]
  %s10 = inlined_call_operand.vmem [shape: f32[2,1,32], index: 10, kind: input, shape index: {}]
  %s11 = inlined_call_operand.vmem [shape: f32[2,1,32], index: 11, kind: input, shape index: {}]
  %s12 = inlined_call_operand.vmem [shape: bf16[2,32,128], index: 12, kind: input, shape index: {}]
  %s13 = inlined_call_operand.vmem [shape: f32[2,1,128], index: 13, kind: input, shape index: {}]
  %s14 = inlined_call_operand.vmem [shape: bf16[2,128,32], index: 14, kind: input, shape index: {}]
  %s15 = inlined_call_operand.vmem [shape: f32[2,1,32], index: 15, kind: input, shape index: {}]
  %s16 = inlined_call_operand.vmem [shape: f32[2,1,32], index: 16, kind: input, shape index: {}]
  %s17 = inlined_call_operand.vmem [shape: f32[2,1,32], index: 17, kind: input, shape index: {}]
  %s18 = inlined_call_operand.hbm [shape: bf16[2,8,32], index: 18, kind: output, shape index: {}]
  %s19 = sld [smem:[#allocation0]]
  $region117: #{tpu_custom_call.1} parent=0
    _
  %s21 = ssub.s32 1, %s19
  %s22 = scalar_select 0, %s21, %s19
  $region1: #{tpu_custom_call.1} parent=0
    #allocation2 [shape = 'u8[4096]{0}', space=vmem, size = 0x1000, scoped, tag = 'input window, operand 0']
    #allocation3 [shape = 's32[2]{0}', space=sflag, size = 0x8, scoped, tag = 'scoped memory for tpu_custom_call.1']
    #allocation4 [shape = 's32[2]{0}', space=sflag, size = 0x8, scoped, tag = 'scoped memory for tpu_custom_call.1']
    #allocation5 [shape = 'u8[1024]{0}', space=vmem, size = 0x400, scoped, tag = 'input window, operand 1']
    #allocation6 [shape = 's32[2]{0}', space=sflag, size = 0x8, scoped, tag = 'scoped memory for tpu_custom_call.1']
    #allocation7 [shape = 'u8[4096]{0}', space=vmem, size = 0x1000, scoped, tag = 'output window, operand 0']
    %23 = vsyncpa [#allocation3], 0
    %s24 = scalar_lea.sflag [#allocation3], 1
    %25 = vsyncpa %s24, 0
    %26 = vsyncpa [#allocation6], 0
    %s27 = scalar_lea.sflag [#allocation6], 1
    %28 = vsyncpa %s27, 0
    %29 = vsyncpa [#allocation4], 0
    %s30 = scalar_lea.sflag [#allocation4], 1
    %31 = vsyncpa %s30, 0
    loop: start=0, step=1, limit=6
    $region2: #{tpu_custom_call.1} parent=1 // loop_pre_header
      _
    $region3: #{tpu_custom_call.1} parent=1 // loop_header
      %s33 = sphi 0, %s37
      %p34 = scmp.ge.s32.totalorder %s33, 6
      %s40 = sphi 0, %s52
      %s41 = sphi 0, %s48
      %s42 = sphi 0, %s40
      %s43 = sphi 0, %s41
      %s44 = sphi 0, %s42
      %s45 = sphi 0, %s43
      %s55 = sphi 0, %s57
      %s58 = sphi 0, %s55
      %s59 = sphi 0, %s58
      %s75 = sphi 0, %s59
      %s81 = sphi 0, %s83
      %s84 = sphi 0, %s81
      %s85 = sphi 0, %s84
      %s101 = sphi 0, %s85
      %s107 = sphi 0, %s109
      %s110 = sphi 0, %s107
      %s111 = sphi 0, %s110
      %s127 = sphi 0, %s111
      %s133 = sphi 0, %s135
      %s136 = sphi 0, %s133
      %s137 = sphi 0, %s136
      %s153 = sphi 0, %s137
      %s159 = sphi 0, %s161
      %s162 = sphi 0, %s159
      %s163 = sphi 0, %s162
      %s179 = sphi 0, %s163
      %s185 = sphi 0, %s187
      %s188 = sphi 0, %s185
      %s189 = sphi 0, %s188
      %s205 = sphi 0, %s189
      %s211 = sphi 0, %s213
      %s214 = sphi 0, %s211
      %s215 = sphi 0, %s214
      %s231 = sphi 0, %s215
      %s237 = sphi 0, %s239
      %s240 = sphi 0, %s237
      %s241 = sphi 0, %s240
      %s257 = sphi 0, %s241
      %s263 = sphi 0, %s265
      %s266 = sphi 0, %s263
      %s267 = sphi 0, %s266
      %s283 = sphi 0, %s267
      %s289 = sphi 0, %s291
      %s292 = sphi 0, %s289
      %s293 = sphi 0, %s292
      %s309 = sphi 0, %s293
      %s315 = sphi 0, %s317
      %s318 = sphi 0, %s315
      %s319 = sphi 0, %s318
      %s335 = sphi 0, %s319
      %s341 = sphi 0, %s343
      %s344 = sphi 0, %s341
      %s345 = sphi 0, %s344
      %s361 = sphi 0, %s345
      %s367 = sphi 0, %s369
      %s370 = sphi 0, %s367
      %s371 = sphi 0, %s370
      %s387 = sphi 0, %s371
      %s393 = sphi 0, %s395
      %s396 = sphi 0, %s393
      %s397 = sphi 0, %s396
      %s413 = sphi 0, %s397
      %s419 = sphi 0, %s421
      %s422 = sphi 0, %s419
      %s423 = sphi 0, %s422
      %s439 = sphi 0, %s423
      %s445 = sphi 0, %s447
      %s448 = sphi 0, %s445
      %s449 = sphi 0, %s448
      %s465 = sphi 0, %s449
      %s471 = sphi 0, %s473
      %s474 = sphi 0, %s471
      %s475 = sphi 0, %s474
      %s491 = sphi 0, %s475
      %s497 = sphi 0, %s499
      %s500 = sphi 0, %s497
      %s501 = sphi 0, %s500
      %s517 = sphi 0, %s501
      %s523 = sphi 0, %s525
      %s526 = sphi 0, %s523
      %s527 = sphi 0, %s526
      %s543 = sphi 0, %s527
    $region4: #{tpu_custom_call.1} parent=1 // loop_header_branch
      %36 = sbr.rel (%p34) target = $region8
    $region5: #{tpu_custom_call.1} parent=1 // loop_body
      %s38 = ssub.s32 %s33, 1
      %s39 = ssub.s32 %s33, 2
      %s46 = sadd.s32 1, %s41
      %p47 = scmp.ge.s32.totalorder %s46, 2
      %s48 = scalar_select %p47, 0, %s46
      %s49 = sadd.s32 1, %s40
      %s50 = scalar_select %p47, %s49, %s40
      %p51 = scmp.ge.s32.totalorder %s50, 2
      %s52 = scalar_select %p51, 0, %s50
      %s53 = ssub.s32 %s40, %s52
      %p54 = scmp.eq.s32.totalorder %s53, 0
      %s56 = sadd.s32 %s55, 1
      %s57 = scalar_select %p54, %s55, %s56
      %p60 = pneg %p54
      %p61 = scmp.eq.s32.totalorder %s33, 3
      %p62 = por %p60, %p61
      %p63 = scmp.ne.s32.totalorder %s55, %s58
      %p64 = scmp.eq.s32.totalorder %s33, 0
      %p65 = por %p63, %p64
      %p66 = scmp.ne.s32.totalorder %s55, %s58
      %p67 = scmp.eq.s32.totalorder %s38, 3
      %p68 = por %p66, %p67
      %p69 = scmp.ne.s32.totalorder %s58, %s59
      %p70 = scmp.eq.s32.totalorder %s38, 0
      %p71 = por %p69, %p70
      %p72 = scmp.ne.s32.totalorder %s58, %s59
      %p73 = scmp.eq.s32.totalorder %s39, 3
      %p74 = por %p72, %p73
      %p76 = scmp.ne.s32.totalorder %s59, %s75
      %p77 = scmp.eq.s32.totalorder %s39, 0
      %p78 = por %p76, %p77
      %s79 = ssub.s32 %s40, %s52
      %p80 = scmp.eq.s32.totalorder %s79, 0
      %s82 = sadd.s32 %s81, 1
      %s83 = scalar_select %p80, %s81, %s82
      %p86 = pneg %p80
      %p87 = scmp.eq.s32.totalorder %s33, 3
      %p88 = por %p86, %p87
      %p89 = scmp.ne.s32.totalorder %s81, %s84
      %p90 = scmp.eq.s32.totalorder %s33, 0
      %p91 = por %p89, %p90
      %p92 = scmp.ne.s32.totalorder %s81, %s84
      %p93 = scmp.eq.s32.totalorder %s38, 3
      %p94 = por %p92, %p93
      %p95 = scmp.ne.s32.totalorder %s84, %s85
      %p96 = scmp.eq.s32.totalorder %s38, 0
      %p97 = por %p95, %p96
      %p98 = scmp.ne.s32.totalorder %s84, %s85
      %p99 = scmp.eq.s32.totalorder %s39, 3
      %p100 = por %p98, %p99
      %p102 = scmp.ne.s32.totalorder %s85, %s101
      %p103 = scmp.eq.s32.totalorder %s39, 0
      %p104 = por %p102, %p103
      %s105 = ssub.s32 %s41, %s48
      %p106 = scmp.eq.s32.totalorder %s105, 0
      %s108 = sadd.s32 %s107, 1
      %s109 = scalar_select %p106, %s107, %s108
      %p112 = pneg %p106
      %p113 = scmp.eq.s32.totalorder %s33, 3
      %p114 = por %p112, %p113
      %p115 = scmp.ne.s32.totalorder %s107, %s110
      %p116 = scmp.eq.s32.totalorder %s33, 0
      %p117 = por %p115, %p116
      %p118 = scmp.ne.s32.totalorder %s107, %s110
      %p119 = scmp.eq.s32.totalorder %s38, 3
      %p120 = por %p118, %p119
      %p121 = scmp.ne.s32.totalorder %s110, %s111
      %p122 = scmp.eq.s32.totalorder %s38, 0
      %p123 = por %p121, %p122
      %p124 = scmp.ne.s32.totalorder %s110, %s111
      %p125 = scmp.eq.s32.totalorder %s39, 3
      %p126 = por %p124, %p125
      %p128 = scmp.ne.s32.totalorder %s111, %s127
      %p129 = scmp.eq.s32.totalorder %s39, 0
      %p130 = por %p128, %p129
      %s131 = ssub.s32 %s41, %s48
      %p132 = scmp.eq.s32.totalorder %s131, 0
      %s134 = sadd.s32 %s133, 1
      %s135 = scalar_select %p132, %s133, %s134
      %p138 = pneg %p132
      %p139 = scmp.eq.s32.totalorder %s33, 3
      %p140 = por %p138, %p139
      %p141 = scmp.ne.s32.totalorder %s133, %s136
      %p142 = scmp.eq.s32.totalorder %s33, 0
      %p143 = por %p141, %p142
      %p144 = scmp.ne.s32.totalorder %s133, %s136
      %p145 = scmp.eq.s32.totalorder %s38, 3
      %p146 = por %p144, %p145
      %p147 = scmp.ne.s32.totalorder %s136, %s137
      %p148 = scmp.eq.s32.totalorder %s38, 0
      %p149 = por %p147, %p148
      %p150 = scmp.ne.s32.totalorder %s136, %s137
      %p151 = scmp.eq.s32.totalorder %s39, 3
      %p152 = por %p150, %p151
      %p154 = scmp.ne.s32.totalorder %s137, %s153
      %p155 = scmp.eq.s32.totalorder %s39, 0
      %p156 = por %p154, %p155
      %s157 = ssub.s32 %s41, %s48
      %p158 = scmp.eq.s32.totalorder %s157, 0
      %s160 = sadd.s32 %s159, 1
      %s161 = scalar_select %p158, %s159, %s160
      %p164 = pneg %p158
      %p165 = scmp.eq.s32.totalorder %s33, 3
      %p166 = por %p164, %p165
      %p167 = scmp.ne.s32.totalorder %s159, %s162
      %p168 = scmp.eq.s32.totalorder %s33, 0
      %p169 = por %p167, %p168
      %p170 = scmp.ne.s32.totalorder %s159, %s162
      %p171 = scmp.eq.s32.totalorder %s38, 3
      %p172 = por %p170, %p171
      %p173 = scmp.ne.s32.totalorder %s162, %s163
      %p174 = scmp.eq.s32.totalorder %s38, 0
      %p175 = por %p173, %p174
      %p176 = scmp.ne.s32.totalorder %s162, %s163
      %p177 = scmp.eq.s32.totalorder %s39, 3
      %p178 = por %p176, %p177
      %p180 = scmp.ne.s32.totalorder %s163, %s179
      %p181 = scmp.eq.s32.totalorder %s39, 0
      %p182 = por %p180, %p181
      %s183 = ssub.s32 %s41, %s48
      %p184 = scmp.eq.s32.totalorder %s183, 0
      %s186 = sadd.s32 %s185, 1
      %s187 = scalar_select %p184, %s185, %s186
      %p190 = pneg %p184
      %p191 = scmp.eq.s32.totalorder %s33, 3
      %p192 = por %p190, %p191
      %p193 = scmp.ne.s32.totalorder %s185, %s188
      %p194 = scmp.eq.s32.totalorder %s33, 0
      %p195 = por %p193, %p194
      %p196 = scmp.ne.s32.totalorder %s185, %s188
      %p197 = scmp.eq.s32.totalorder %s38, 3
      %p198 = por %p196, %p197
      %p199 = scmp.ne.s32.totalorder %s188, %s189
      %p200 = scmp.eq.s32.totalorder %s38, 0
      %p201 = por %p199, %p200
      %p202 = scmp.ne.s32.totalorder %s188, %s189
      %p203 = scmp.eq.s32.totalorder %s39, 3
      %p204 = por %p202, %p203
      %p206 = scmp.ne.s32.totalorder %s189, %s205
      %p207 = scmp.eq.s32.totalorder %s39, 0
      %p208 = por %p206, %p207
      %s209 = ssub.s32 %s41, %s48
      %p210 = scmp.eq.s32.totalorder %s209, 0
      %s212 = sadd.s32 %s211, 1
      %s213 = scalar_select %p210, %s211, %s212
      %p216 = pneg %p210
      %p217 = scmp.eq.s32.totalorder %s33, 3
      %p218 = por %p216, %p217
      %p219 = scmp.ne.s32.totalorder %s211, %s214
      %p220 = scmp.eq.s32.totalorder %s33, 0
      %p221 = por %p219, %p220
      %p222 = scmp.ne.s32.totalorder %s211, %s214
      %p223 = scmp.eq.s32.totalorder %s38, 3
      %p224 = por %p222, %p223
      %p225 = scmp.ne.s32.totalorder %s214, %s215
      %p226 = scmp.eq.s32.totalorder %s38, 0
      %p227 = por %p225, %p226
      %p228 = scmp.ne.s32.totalorder %s214, %s215
      %p229 = scmp.eq.s32.totalorder %s39, 3
      %p230 = por %p228, %p229
      %p232 = scmp.ne.s32.totalorder %s215, %s231
      %p233 = scmp.eq.s32.totalorder %s39, 0
      %p234 = por %p232, %p233
      %s235 = ssub.s32 %s41, %s48
      %p236 = scmp.eq.s32.totalorder %s235, 0
      %s238 = sadd.s32 %s237, 1
      %s239 = scalar_select %p236, %s237, %s238
      %p242 = pneg %p236
      %p243 = scmp.eq.s32.totalorder %s33, 3
      %p244 = por %p242, %p243
      %p245 = scmp.ne.s32.totalorder %s237, %s240
      %p246 = scmp.eq.s32.totalorder %s33, 0
      %p247 = por %p245, %p246
      %p248 = scmp.ne.s32.totalorder %s237, %s240
      %p249 = scmp.eq.s32.totalorder %s38, 3
      %p250 = por %p248, %p249
      %p251 = scmp.ne.s32.totalorder %s240, %s241
      %p252 = scmp.eq.s32.totalorder %s38, 0
      %p253 = por %p251, %p252
      %p254 = scmp.ne.s32.totalorder %s240, %s241
      %p255 = scmp.eq.s32.totalorder %s39, 3
      %p256 = por %p254, %p255
      %p258 = scmp.ne.s32.totalorder %s241, %s257
      %p259 = scmp.eq.s32.totalorder %s39, 0
      %p260 = por %p258, %p259
      %s261 = ssub.s32 %s41, %s48
      %p262 = scmp.eq.s32.totalorder %s261, 0
      %s264 = sadd.s32 %s263, 1
      %s265 = scalar_select %p262, %s263, %s264
      %p268 = pneg %p262
      %p269 = scmp.eq.s32.totalorder %s33, 3
      %p270 = por %p268, %p269
      %p271 = scmp.ne.s32.totalorder %s263, %s266
      %p272 = scmp.eq.s32.totalorder %s33, 0
      %p273 = por %p271, %p272
      %p274 = scmp.ne.s32.totalorder %s263, %s266
      %p275 = scmp.eq.s32.totalorder %s38, 3
      %p276 = por %p274, %p275
      %p277 = scmp.ne.s32.totalorder %s266, %s267
      %p278 = scmp.eq.s32.totalorder %s38, 0
      %p279 = por %p277, %p278
      %p280 = scmp.ne.s32.totalorder %s266, %s267
      %p281 = scmp.eq.s32.totalorder %s39, 3
      %p282 = por %p280, %p281
      %p284 = scmp.ne.s32.totalorder %s267, %s283
      %p285 = scmp.eq.s32.totalorder %s39, 0
      %p286 = por %p284, %p285
      %s287 = ssub.s32 %s41, %s48
      %p288 = scmp.eq.s32.totalorder %s287, 0
      %s290 = sadd.s32 %s289, 1
      %s291 = scalar_select %p288, %s289, %s290
      %p294 = pneg %p288
      %p295 = scmp.eq.s32.totalorder %s33, 3
      %p296 = por %p294, %p295
      %p297 = scmp.ne.s32.totalorder %s289, %s292
      %p298 = scmp.eq.s32.totalorder %s33, 0
      %p299 = por %p297, %p298
      %p300 = scmp.ne.s32.totalorder %s289, %s292
      %p301 = scmp.eq.s32.totalorder %s38, 3
      %p302 = por %p300, %p301
      %p303 = scmp.ne.s32.totalorder %s292, %s293
      %p304 = scmp.eq.s32.totalorder %s38, 0
      %p305 = por %p303, %p304
      %p306 = scmp.ne.s32.totalorder %s292, %s293
      %p307 = scmp.eq.s32.totalorder %s39, 3
      %p308 = por %p306, %p307
      %p310 = scmp.ne.s32.totalorder %s293, %s309
      %p311 = scmp.eq.s32.totalorder %s39, 0
      %p312 = por %p310, %p311
      %s313 = ssub.s32 %s41, %s48
      %p314 = scmp.eq.s32.totalorder %s313, 0
      %s316 = sadd.s32 %s315, 1
      %s317 = scalar_select %p314, %s315, %s316
      %p320 = pneg %p314
      %p321 = scmp.eq.s32.totalorder %s33, 3
      %p322 = por %p320, %p321
      %p323 = scmp.ne.s32.totalorder %s315, %s318
      %p324 = scmp.eq.s32.totalorder %s33, 0
      %p325 = por %p323, %p324
      %p326 = scmp.ne.s32.totalorder %s315, %s318
      %p327 = scmp.eq.s32.totalorder %s38, 3
      %p328 = por %p326, %p327
      %p329 = scmp.ne.s32.totalorder %s318, %s319
      %p330 = scmp.eq.s32.totalorder %s38, 0
      %p331 = por %p329, %p330
      %p332 = scmp.ne.s32.totalorder %s318, %s319
      %p333 = scmp.eq.s32.totalorder %s39, 3
      %p334 = por %p332, %p333
      %p336 = scmp.ne.s32.totalorder %s319, %s335
      %p337 = scmp.eq.s32.totalorder %s39, 0
      %p338 = por %p336, %p337
      %s339 = ssub.s32 %s41, %s48
      %p340 = scmp.eq.s32.totalorder %s339, 0
      %s342 = sadd.s32 %s341, 1
      %s343 = scalar_select %p340, %s341, %s342
      %p346 = pneg %p340
      %p347 = scmp.eq.s32.totalorder %s33, 3
      %p348 = por %p346, %p347
      %p349 = scmp.ne.s32.totalorder %s341, %s344
      %p350 = scmp.eq.s32.totalorder %s33, 0
      %p351 = por %p349, %p350
      %p352 = scmp.ne.s32.totalorder %s341, %s344
      %p353 = scmp.eq.s32.totalorder %s38, 3
      %p354 = por %p352, %p353
      %p355 = scmp.ne.s32.totalorder %s344, %s345
      %p356 = scmp.eq.s32.totalorder %s38, 0
      %p357 = por %p355, %p356
      %p358 = scmp.ne.s32.totalorder %s344, %s345
      %p359 = scmp.eq.s32.totalorder %s39, 3
      %p360 = por %p358, %p359
      %p362 = scmp.ne.s32.totalorder %s345, %s361
      %p363 = scmp.eq.s32.totalorder %s39, 0
      %p364 = por %p362, %p363
      %s365 = ssub.s32 %s41, %s48
      %p366 = scmp.eq.s32.totalorder %s365, 0
      %s368 = sadd.s32 %s367, 1
      %s369 = scalar_select %p366, %s367, %s368
      %p372 = pneg %p366
      %p373 = scmp.eq.s32.totalorder %s33, 3
      %p374 = por %p372, %p373
      %p375 = scmp.ne.s32.totalorder %s367, %s370
      %p376 = scmp.eq.s32.totalorder %s33, 0
      %p377 = por %p375, %p376
      %p378 = scmp.ne.s32.totalorder %s367, %s370
      %p379 = scmp.eq.s32.totalorder %s38, 3
      %p380 = por %p378, %p379
      %p381 = scmp.ne.s32.totalorder %s370, %s371
      %p382 = scmp.eq.s32.totalorder %s38, 0
      %p383 = por %p381, %p382
      %p384 = scmp.ne.s32.totalorder %s370, %s371
      %p385 = scmp.eq.s32.totalorder %s39, 3
      %p386 = por %p384, %p385
      %p388 = scmp.ne.s32.totalorder %s371, %s387
      %p389 = scmp.eq.s32.totalorder %s39, 0
      %p390 = por %p388, %p389
      %s391 = ssub.s32 %s41, %s48
      %p392 = scmp.eq.s32.totalorder %s391, 0
      %s394 = sadd.s32 %s393, 1
      %s395 = scalar_select %p392, %s393, %s394
      %p398 = pneg %p392
      %p399 = scmp.eq.s32.totalorder %s33, 3
      %p400 = por %p398, %p399
      %p401 = scmp.ne.s32.totalorder %s393, %s396
      %p402 = scmp.eq.s32.totalorder %s33, 0
      %p403 = por %p401, %p402
      %p404 = scmp.ne.s32.totalorder %s393, %s396
      %p405 = scmp.eq.s32.totalorder %s38, 3
      %p406 = por %p404, %p405
      %p407 = scmp.ne.s32.totalorder %s396, %s397
      %p408 = scmp.eq.s32.totalorder %s38, 0
      %p409 = por %p407, %p408
      %p410 = scmp.ne.s32.totalorder %s396, %s397
      %p411 = scmp.eq.s32.totalorder %s39, 3
      %p412 = por %p410, %p411
      %p414 = scmp.ne.s32.totalorder %s397, %s413
      %p415 = scmp.eq.s32.totalorder %s39, 0
      %p416 = por %p414, %p415
      %s417 = ssub.s32 %s41, %s48
      %p418 = scmp.eq.s32.totalorder %s417, 0
      %s420 = sadd.s32 %s419, 1
      %s421 = scalar_select %p418, %s419, %s420
      %p424 = pneg %p418
      %p425 = scmp.eq.s32.totalorder %s33, 3
      %p426 = por %p424, %p425
      %p427 = scmp.ne.s32.totalorder %s419, %s422
      %p428 = scmp.eq.s32.totalorder %s33, 0
      %p429 = por %p427, %p428
      %p430 = scmp.ne.s32.totalorder %s419, %s422
      %p431 = scmp.eq.s32.totalorder %s38, 3
      %p432 = por %p430, %p431
      %p433 = scmp.ne.s32.totalorder %s422, %s423
      %p434 = scmp.eq.s32.totalorder %s38, 0
      %p435 = por %p433, %p434
      %p436 = scmp.ne.s32.totalorder %s422, %s423
      %p437 = scmp.eq.s32.totalorder %s39, 3
      %p438 = por %p436, %p437
      %p440 = scmp.ne.s32.totalorder %s423, %s439
      %p441 = scmp.eq.s32.totalorder %s39, 0
      %p442 = por %p440, %p441
      %s443 = ssub.s32 %s41, %s48
      %p444 = scmp.eq.s32.totalorder %s443, 0
      %s446 = sadd.s32 %s445, 1
      %s447 = scalar_select %p444, %s445, %s446
      %p450 = pneg %p444
      %p451 = scmp.eq.s32.totalorder %s33, 3
      %p452 = por %p450, %p451
      %p453 = scmp.ne.s32.totalorder %s445, %s448
      %p454 = scmp.eq.s32.totalorder %s33, 0
      %p455 = por %p453, %p454
      %p456 = scmp.ne.s32.totalorder %s445, %s448
      %p457 = scmp.eq.s32.totalorder %s38, 3
      %p458 = por %p456, %p457
      %p459 = scmp.ne.s32.totalorder %s448, %s449
      %p460 = scmp.eq.s32.totalorder %s38, 0
      %p461 = por %p459, %p460
      %p462 = scmp.ne.s32.totalorder %s448, %s449
      %p463 = scmp.eq.s32.totalorder %s39, 3
      %p464 = por %p462, %p463
      %p466 = scmp.ne.s32.totalorder %s449, %s465
      %p467 = scmp.eq.s32.totalorder %s39, 0
      %p468 = por %p466, %p467
      %s469 = ssub.s32 %s41, %s48
      %p470 = scmp.eq.s32.totalorder %s469, 0
      %s472 = sadd.s32 %s471, 1
      %s473 = scalar_select %p470, %s471, %s472
      %p476 = pneg %p470
      %p477 = scmp.eq.s32.totalorder %s33, 3
      %p478 = por %p476, %p477
      %p479 = scmp.ne.s32.totalorder %s471, %s474
      %p480 = scmp.eq.s32.totalorder %s33, 0
      %p481 = por %p479, %p480
      %p482 = scmp.ne.s32.totalorder %s471, %s474
      %p483 = scmp.eq.s32.totalorder %s38, 3
      %p484 = por %p482, %p483
      %p485 = scmp.ne.s32.totalorder %s474, %s475
      %p486 = scmp.eq.s32.totalorder %s38, 0
      %p487 = por %p485, %p486
      %p488 = scmp.ne.s32.totalorder %s474, %s475
      %p489 = scmp.eq.s32.totalorder %s39, 3
      %p490 = por %p488, %p489
      %p492 = scmp.ne.s32.totalorder %s475, %s491
      %p493 = scmp.eq.s32.totalorder %s39, 0
      %p494 = por %p492, %p493
      %s495 = ssub.s32 %s41, %s48
      %p496 = scmp.eq.s32.totalorder %s495, 0
      %s498 = sadd.s32 %s497, 1
      %s499 = scalar_select %p496, %s497, %s498
      %p502 = pneg %p496
      %p503 = scmp.eq.s32.totalorder %s33, 3
      %p504 = por %p502, %p503
      %p505 = scmp.ne.s32.totalorder %s497, %s500
      %p506 = scmp.eq.s32.totalorder %s33, 0
      %p507 = por %p505, %p506
      %p508 = scmp.ne.s32.totalorder %s497, %s500
      %p509 = scmp.eq.s32.totalorder %s38, 3
      %p510 = por %p508, %p509
      %p511 = scmp.ne.s32.totalorder %s500, %s501
      %p512 = scmp.eq.s32.totalorder %s38, 0
      %p513 = por %p511, %p512
      %p514 = scmp.ne.s32.totalorder %s500, %s501
      %p515 = scmp.eq.s32.totalorder %s39, 3
      %p516 = por %p514, %p515
      %p518 = scmp.ne.s32.totalorder %s501, %s517
      %p519 = scmp.eq.s32.totalorder %s39, 0
      %p520 = por %p518, %p519
      %s521 = ssub.s32 %s40, %s52
      %p522 = scmp.eq.s32.totalorder %s521, 0
      %s524 = sadd.s32 %s523, 1
      %s525 = scalar_select %p522, %s523, %s524
      %p528 = pneg %p522
      %p529 = scmp.eq.s32.totalorder %s33, 3
      %p530 = por %p528, %p529
      %p531 = scmp.ne.s32.totalorder %s523, %s526
      %p532 = scmp.eq.s32.totalorder %s33, 0
      %p533 = por %p531, %p532
      %p534 = scmp.ne.s32.totalorder %s523, %s526
      %p535 = scmp.eq.s32.totalorder %s38, 3
      %p536 = por %p534, %p535
      %p537 = scmp.ne.s32.totalorder %s526, %s527
      %p538 = scmp.eq.s32.totalorder %s38, 0
      %p539 = por %p537, %p538
      %p540 = scmp.ne.s32.totalorder %s526, %s527
      %p541 = scmp.eq.s32.totalorder %s39, 3
      %p542 = por %p540, %p541
      %p544 = scmp.ne.s32.totalorder %s527, %s543
      %p545 = scmp.eq.s32.totalorder %s39, 0
      %p546 = por %p544, %p545
      %p547 = scmp.le.s32.totalorder 1, %s33
      %p548 = scmp.lt.s32.totalorder %s33, 5
      %p549 = pnand %p547, %p548
      %p550 = pneg %p549
      // Predicated region
      $region9: #{tpu_custom_call.1} parent=5 // pred_check
        _
      $region10: #{tpu_custom_call.1} parent=5 // pred_check_branch
        %552 = sbr.rel (%p549) target = $region12
      $region11: #{tpu_custom_call.1} parent=5 // pred_region
        %s553 = ssub.s32 %s33, 1
      $region12: #{tpu_custom_call.1} parent=5 // pred_fallthru
        _
      %p554 = scmp.lt.s32.totalorder %s33, 4
      // Predicated region
      $region13: #{tpu_custom_call.1} parent=5 // pred_check
        %p555 = pneg %p554
      $region14: #{tpu_custom_call.1} parent=5 // pred_check_branch
        %557 = sbr.rel (%p555) target = $region16
      $region15: #{tpu_custom_call.1} parent=5 // pred_region
        // Predicated region
        $region17: #{tpu_custom_call.1} parent=15 // pred_check
          %p558 = pneg %p65
        $region18: #{tpu_custom_call.1} parent=15 // pred_check_branch
          %560 = sbr.rel (%p558) target = $region20
        $region19: #{tpu_custom_call.1} parent=15 // pred_region
          %s561 = sand.u32 %s55, 1
          %s562 = scalar_lea.sflag [#allocation3], %s561
          %s563 = sand.u32 %s55, 1
          %s564 = smul.addr %s563, 4
          %s565 = scalar_lea.vmem [#allocation2], %s564
          %s567 = ssub.s32 64, 64
          %568 = vsyncadd %s562, %s567
          %s569 = smul.addr %s40, 64
          %s570 = scalar_lea.hbm %s0, %s569
          %s572 = sshll.u32 %s565, 4
          %s573 = int_to_ptr.vmem [resolvable:$true] %s572
          %575 = dma.hbm_to_vmem [thread:$0]  %s570, 64, %s573, %s562
        $region20: #{tpu_custom_call.1} parent=15 // pred_fallthru
          _
        // Predicated region
        $region21: #{tpu_custom_call.1} parent=15 // pred_check
          %p576 = pneg %p91
        $region22: #{tpu_custom_call.1} parent=15 // pred_check_branch
          %578 = sbr.rel (%p576) target = $region24
        $region23: #{tpu_custom_call.1} parent=15 // pred_region
          %s579 = sand.u32 %s81, 1
          %s580 = scalar_lea.sflag [#allocation6], %s579
          %s581 = sand.u32 %s81, 1
          %s582 = scalar_lea.vmem [#allocation5], %s581
          %s584 = ssub.s32 16, 16
          %585 = vsyncadd %s580, %s584
          %s586 = smul.addr %s40, 16
          %s587 = scalar_lea.hbm %s1, %s586
          %s589 = sshll.u32 %s582, 4
          %s590 = int_to_ptr.vmem [resolvable:$true] %s589
          %592 = dma.hbm_to_vmem [thread:$0]  %s587, 16, %s590, %s580
        $region24: #{tpu_custom_call.1} parent=15 // pred_fallthru
          _
        // Predicated region
        $region25: #{tpu_custom_call.1} parent=15 // pred_check
          %p593 = pneg %p117
        $region26: #{tpu_custom_call.1} parent=15 // pred_check_branch
          %595 = sbr.rel (%p593) target = $region28
        $region27: #{tpu_custom_call.1} parent=15 // pred_region
          %p596 = scmp.lt.s32.totalorder %s41, 1
          %s597 = scalar_select %p596, %s41, 1
          %s598 = smul.addr %s597, 4
          %s599 = smul.addr %s598, 4
          %s600 = scalar_lea.vmem %s2, %s599
        $region28: #{tpu_custom_call.1} parent=15 // pred_fallthru
          _
        // Predicated region
        $region29: #{tpu_custom_call.1} parent=15 // pred_check
          %p601 = pneg %p143
        $region30: #{tpu_custom_call.1} parent=15 // pred_check_branch
          %603 = sbr.rel (%p601) target = $region32
        $region31: #{tpu_custom_call.1} parent=15 // pred_region
          %p604 = scmp.lt.s32.totalorder %s41, 1
          %s605 = scalar_select %p604, %s41, 1
          %s606 = scalar_lea.vmem %s3, %s605
        $region32: #{tpu_custom_call.1} parent=15 // pred_fallthru
          _
        // Predicated region
        $region33: #{tpu_custom_call.1} parent=15 // pred_check
          %p607 = pneg %p169
        $region34: #{tpu_custom_call.1} parent=15 // pred_check_branch
          %609 = sbr.rel (%p607) target = $region36
        $region35: #{tpu_custom_call.1} parent=15 // pred_region
          %p610 = scmp.lt.s32.totalorder %s41, 1
          %s611 = scalar_select %p610, %s41, 1
          %s612 = smul.addr %s611, 4
          %s613 = smul.addr %s612, 4
          %s614 = scalar_lea.vmem %s4, %s613
        $region36: #{tpu_custom_call.1} parent=15 // pred_fallthru
          _
        // Predicated region
        $region37: #{tpu_custom_call.1} parent=15 // pred_check
          %p615 = pneg %p195
        $region38: #{tpu_custom_call.1} parent=15 // pred_check_branch
          %617 = sbr.rel (%p615) target = $region40
        $region39: #{tpu_custom_call.1} parent=15 // pred_region
          %p618 = scmp.lt.s32.totalorder %s41, 1
          %s619 = scalar_select %p618, %s41, 1
          %s620 = scalar_lea.vmem %s5, %s619
        $region40: #{tpu_custom_call.1} parent=15 // pred_fallthru
          _
        // Predicated region
        $region41: #{tpu_custom_call.1} parent=15 // pred_check
          %p621 = pneg %p221
        $region42: #{tpu_custom_call.1} parent=15 // pred_check_branch
          %623 = sbr.rel (%p621) target = $region44
        $region43: #{tpu_custom_call.1} parent=15 // pred_region
          %p624 = scmp.lt.s32.totalorder %s41, 1
          %s625 = scalar_select %p624, %s41, 1
          %s626 = smul.addr %s625, 4
          %s627 = smul.addr %s626, 4
          %s628 = scalar_lea.vmem %s6, %s627
        $region44: #{tpu_custom_call.1} parent=15 // pred_fallthru
          _
        // Predicated region
        $region45: #{tpu_custom_call.1} parent=15 // pred_check
          %p629 = pneg %p247
        $region46: #{tpu_custom_call.1} parent=15 // pred_check_branch
          %631 = sbr.rel (%p629) target = $region48
        $region47: #{tpu_custom_call.1} parent=15 // pred_region
          %p632 = scmp.lt.s32.totalorder %s41, 1
          %s633 = scalar_select %p632, %s41, 1
          %s634 = scalar_lea.vmem %s7, %s633
        $region48: #{tpu_custom_call.1} parent=15 // pred_fallthru
          _
        // Predicated region
        $region49: #{tpu_custom_call.1} parent=15 // pred_check
          %p635 = pneg %p273
        $region50: #{tpu_custom_call.1} parent=15 // pred_check_branch
          %637 = sbr.rel (%p635) target = $region52
        $region51: #{tpu_custom_call.1} parent=15 // pred_region
          %p638 = scmp.lt.s32.totalorder %s41, 1
          %s639 = scalar_select %p638, %s41, 1
          %s640 = smul.addr %s639, 4
          %s641 = smul.addr %s640, 4
          %s642 = scalar_lea.vmem %s8, %s641
        $region52: #{tpu_custom_call.1} parent=15 // pred_fallthru
          _
        // Predicated region
        $region53: #{tpu_custom_call.1} parent=15 // pred_check
          %p643 = pneg %p299
        $region54: #{tpu_custom_call.1} parent=15 // pred_check_branch
          %645 = sbr.rel (%p643) target = $region56
        $region55: #{tpu_custom_call.1} parent=15 // pred_region
          %p646 = scmp.lt.s32.totalorder %s41, 1
          %s647 = scalar_select %p646, %s41, 1
          %s648 = scalar_lea.vmem %s9, %s647
        $region56: #{tpu_custom_call.1} parent=15 // pred_fallthru
          _
        // Predicated region
        $region57: #{tpu_custom_call.1} parent=15 // pred_check
          %p649 = pneg %p325
        $region58: #{tpu_custom_call.1} parent=15 // pred_check_branch
          %651 = sbr.rel (%p649) target = $region60
        $region59: #{tpu_custom_call.1} parent=15 // pred_region
          %p652 = scmp.lt.s32.totalorder %s41, 1
          %s653 = scalar_select %p652, %s41, 1
          %s654 = scalar_lea.vmem %s10, %s653
        $region60: #{tpu_custom_call.1} parent=15 // pred_fallthru
          _
        // Predicated region
        $region61: #{tpu_custom_call.1} parent=15 // pred_check
          %p655 = pneg %p351
        $region62: #{tpu_custom_call.1} parent=15 // pred_check_branch
          %657 = sbr.rel (%p655) target = $region64
        $region63: #{tpu_custom_call.1} parent=15 // pred_region
          %p658 = scmp.lt.s32.totalorder %s41, 1
          %s659 = scalar_select %p658, %s41, 1
          %s660 = scalar_lea.vmem %s11, %s659
        $region64: #{tpu_custom_call.1} parent=15 // pred_fallthru
          _
        // Predicated region
        $region65: #{tpu_custom_call.1} parent=15 // pred_check
          %p661 = pneg %p377
        $region66: #{tpu_custom_call.1} parent=15 // pred_check_branch
          %663 = sbr.rel (%p661) target = $region68
        $region67: #{tpu_custom_call.1} parent=15 // pred_region
          %p664 = scmp.lt.s32.totalorder %s41, 1
          %s665 = scalar_select %p664, %s41, 1
          %s666 = smul.addr %s665, 4
          %s667 = smul.addr %s666, 4
          %s668 = scalar_lea.vmem %s12, %s667
        $region68: #{tpu_custom_call.1} parent=15 // pred_fallthru
          _
        // Predicated region
        $region69: #{tpu_custom_call.1} parent=15 // pred_check
          %p669 = pneg %p403
        $region70: #{tpu_custom_call.1} parent=15 // pred_check_branch
          %671 = sbr.rel (%p669) target = $region72
        $region71: #{tpu_custom_call.1} parent=15 // pred_region
          %p672 = scmp.lt.s32.totalorder %s41, 1
          %s673 = scalar_select %p672, %s41, 1
          %s674 = scalar_lea.vmem %s13, %s673
        $region72: #{tpu_custom_call.1} parent=15 // pred_fallthru
          _
        // Predicated region
        $region73: #{tpu_custom_call.1} parent=15 // pred_check
          %p675 = pneg %p429
        $region74: #{tpu_custom_call.1} parent=15 // pred_check_branch
          %677 = sbr.rel (%p675) target = $region76
        $region75: #{tpu_custom_call.1} parent=15 // pred_region
          %p678 = scmp.lt.s32.totalorder %s41, 1
          %s679 = scalar_select %p678, %s41, 1
          %s680 = smul.addr %s679, 16
          %s681 = smul.addr %s680, 4
          %s682 = scalar_lea.vmem %s14, %s681
        $region76: #{tpu_custom_call.1} parent=15 // pred_fallthru
          _
        // Predicated region
        $region77: #{tpu_custom_call.1} parent=15 // pred_check
          %p683 = pneg %p455
        $region78: #{tpu_custom_call.1} parent=15 // pred_check_branch
          %685 = sbr.rel (%p683) target = $region80
        $region79: #{tpu_custom_call.1} parent=15 // pred_region
          %p686 = scmp.lt.s32.totalorder %s41, 1
          %s687 = scalar_select %p686, %s41, 1
          %s688 = scalar_lea.vmem %s15, %s687
        $region80: #{tpu_custom_call.1} parent=15 // pred_fallthru
          _
        // Predicated region
        $region81: #{tpu_custom_call.1} parent=15 // pred_check
          %p689 = pneg %p481
        $region82: #{tpu_custom_call.1} parent=15 // pred_check_branch
          %691 = sbr.rel (%p689) target = $region84
        $region83: #{tpu_custom_call.1} parent=15 // pred_region
          %p692 = scmp.lt.s32.totalorder %s41, 1
          %s693 = scalar_select %p692, %s41, 1
          %s694 = scalar_lea.vmem %s16, %s693
        $region84: #{tpu_custom_call.1} parent=15 // pred_fallthru
          _
        // Predicated region
        $region85: #{tpu_custom_call.1} parent=15 // pred_check
          %p695 = pneg %p507
        $region86: #{tpu_custom_call.1} parent=15 // pred_check_branch
          %697 = sbr.rel (%p695) target = $region88
        $region87: #{tpu_custom_call.1} parent=15 // pred_region
          %p698 = scmp.lt.s32.totalorder %s41, 1
          %s699 = scalar_select %p698, %s41, 1
          %s700 = scalar_lea.vmem %s17, %s699
        $region88: #{tpu_custom_call.1} parent=15 // pred_fallthru
          _
      $region16: #{tpu_custom_call.1} parent=5 // pred_fallthru
        _
      %p701 = scmp.le.s32.totalorder 1, %s33
      %p702 = scmp.lt.s32.totalorder %s33, 5
      %p703 = pnand %p701, %p702
      %p704 = pneg %p703
      // Predicated region
      $region89: #{tpu_custom_call.1} parent=5 // pred_check
        _
      $region90: #{tpu_custom_call.1} parent=5 // pred_check_branch
        %706 = sbr.rel (%p703) target = $region92
      $region91: #{tpu_custom_call.1} parent=5 // pred_region
        %s707 = ssub.s32 %s33, 1
        %s708 = sand.u32 %s58, 1
        %s709 = scalar_lea.sflag [#allocation3], %s708
        %s710 = sand.u32 %s58, 1
        %s711 = smul.addr %s710, 4
        %s712 = scalar_lea.vmem [#allocation2], %s711
        // Predicated region
        $region93: #{tpu_custom_call.1} parent=91 // pred_check
          %p713 = pneg %p71
        $region94: #{tpu_custom_call.1} parent=91 // pred_check_branch
          %715 = sbr.rel (%p713) target = $region96
        $region95: #{tpu_custom_call.1} parent=91 // pred_region
          %716 = dma.done %s709, 64
        $region96: #{tpu_custom_call.1} parent=91 // pred_fallthru
          _
        %s717 = sand.u32 %s84, 1
        %s718 = scalar_lea.sflag [#allocation6], %s717
        %s719 = sand.u32 %s84, 1
        %s720 = scalar_lea.vmem [#allocation5], %s719
        // Predicated region
        $region97: #{tpu_custom_call.1} parent=91 // pred_check
          %p721 = pneg %p97
        $region98: #{tpu_custom_call.1} parent=91 // pred_check_branch
          %723 = sbr.rel (%p721) target = $region100
        $region99: #{tpu_custom_call.1} parent=91 // pred_region
          %724 = dma.done %s718, 16
        $region100: #{tpu_custom_call.1} parent=91 // pred_fallthru
          _
        %s725 = sand.u32 %s58, 1
        %s726 = scalar_lea.sflag [#allocation3], %s725
        %s727 = sand.u32 %s58, 1
        %s728 = smul.addr %s727, 4
        %s729 = scalar_lea.vmem [#allocation2], %s728
        %p730 = pneg %p71
        %p731 = pneg %p68
        %s732 = sand.u32 %s84, 1
        %s733 = scalar_lea.sflag [#allocation6], %s732
        %s734 = sand.u32 %s84, 1
        %s735 = scalar_lea.vmem [#allocation5], %s734
        %p736 = pneg %p97
        %p737 = pneg %p94
        %p738 = scmp.lt.s32.totalorder %s43, 1
        %s739 = scalar_select %p738, %s43, 1
        %s740 = smul.addr %s739, 4
        %s741 = smul.addr %s740, 4
        %s742 = scalar_lea.vmem %s2, %s741
        %p743 = pneg %p123
        %p744 = pneg %p120
        %p745 = scmp.lt.s32.totalorder %s43, 1
        %s746 = scalar_select %p745, %s43, 1
        %s747 = scalar_lea.vmem %s3, %s746
        %p748 = pneg %p149
        %p749 = pneg %p146
        %p750 = scmp.lt.s32.totalorder %s43, 1
        %s751 = scalar_select %p750, %s43, 1
        %s752 = smul.addr %s751, 4
        %s753 = smul.addr %s752, 4
        %s754 = scalar_lea.vmem %s4, %s753
        %p755 = pneg %p175
        %p756 = pneg %p172
        %p757 = scmp.lt.s32.totalorder %s43, 1
        %s758 = scalar_select %p757, %s43, 1
        %s759 = scalar_lea.vmem %s5, %s758
        %p760 = pneg %p201
        %p761 = pneg %p198
        %p762 = scmp.lt.s32.totalorder %s43, 1
        %s763 = scalar_select %p762, %s43, 1
        %s764 = smul.addr %s763, 4
        %s765 = smul.addr %s764, 4
        %s766 = scalar_lea.vmem %s6, %s765
        %p767 = pneg %p227
        %p768 = pneg %p224
        %p769 = scmp.lt.s32.totalorder %s43, 1
        %s770 = scalar_select %p769, %s43, 1
        %s771 = scalar_lea.vmem %s7, %s770
        %p772 = pneg %p253
        %p773 = pneg %p250
        %p774 = scmp.lt.s32.totalorder %s43, 1
        %s775 = scalar_select %p774, %s43, 1
        %s776 = smul.addr %s775, 4
        %s777 = smul.addr %s776, 4
        %s778 = scalar_lea.vmem %s8, %s777
        %p779 = pneg %p279
        %p780 = pneg %p276
        %p781 = scmp.lt.s32.totalorder %s43, 1
        %s782 = scalar_select %p781, %s43, 1
        %s783 = scalar_lea.vmem %s9, %s782
        %p784 = pneg %p305
        %p785 = pneg %p302
        %p786 = scmp.lt.s32.totalorder %s43, 1
        %s787 = scalar_select %p786, %s43, 1
        %s788 = scalar_lea.vmem %s10, %s787
        %p789 = pneg %p331
        %p790 = pneg %p328
        %p791 = scmp.lt.s32.totalorder %s43, 1
        %s792 = scalar_select %p791, %s43, 1
        %s793 = scalar_lea.vmem %s11, %s792
        %p794 = pneg %p357
        %p795 = pneg %p354
        %p796 = scmp.lt.s32.totalorder %s43, 1
        %s797 = scalar_select %p796, %s43, 1
        %s798 = smul.addr %s797, 4
        %s799 = smul.addr %s798, 4
        %s800 = scalar_lea.vmem %s12, %s799
        %p801 = pneg %p383
        %p802 = pneg %p380
        %p803 = scmp.lt.s32.totalorder %s43, 1
        %s804 = scalar_select %p803, %s43, 1
        %s805 = scalar_lea.vmem %s13, %s804
        %p806 = pneg %p409
        %p807 = pneg %p406
        %p808 = scmp.lt.s32.totalorder %s43, 1
        %s809 = scalar_select %p808, %s43, 1
        %s810 = smul.addr %s809, 16
        %s811 = smul.addr %s810, 4
        %s812 = scalar_lea.vmem %s14, %s811
        %p813 = pneg %p435
        %p814 = pneg %p432
        %p815 = scmp.lt.s32.totalorder %s43, 1
        %s816 = scalar_select %p815, %s43, 1
        %s817 = scalar_lea.vmem %s15, %s816
        %p818 = pneg %p461
        %p819 = pneg %p458
        %p820 = scmp.lt.s32.totalorder %s43, 1
        %s821 = scalar_select %p820, %s43, 1
        %s822 = scalar_lea.vmem %s16, %s821
        %p823 = pneg %p487
        %p824 = pneg %p484
        %p825 = scmp.lt.s32.totalorder %s43, 1
        %s826 = scalar_select %p825, %s43, 1
        %s827 = scalar_lea.vmem %s17, %s826
        %p828 = pneg %p513
        %p829 = pneg %p510
        %p830 = pneg %p539
        %p831 = pneg %p536
        %s832 = sand.u32 %s526, 1
        %s833 = scalar_lea.sflag [#allocation4], %s832
        %s834 = sand.u32 %s526, 1
        %s835 = smul.addr %s834, 4
        %s836 = scalar_lea.vmem [#allocation7], %s835
        %p837 = scmp.lt.s32.totalorder %s43, 1
        %s838 = scalar_select %p837, %s43, 1
        %s839 = smul.addr %s838, 4
        %s840 = smul.addr %s839, 4
        %s841 = scalar_lea.vmem %s2, %s840
        %p842 = scmp.lt.s32.totalorder %s43, 1
        %s843 = scalar_select %p842, %s43, 1
        %s844 = scalar_lea.vmem %s3, %s843
        %p845 = scmp.lt.s32.totalorder %s43, 1
        %s846 = scalar_select %p845, %s43, 1
        %s847 = smul.addr %s846, 4
        %s848 = smul.addr %s847, 4
        %s849 = scalar_lea.vmem %s4, %s848
        %p850 = scmp.lt.s32.totalorder %s43, 1
        %s851 = scalar_select %p850, %s43, 1
        %s852 = scalar_lea.vmem %s5, %s851
        %p853 = scmp.lt.s32.totalorder %s43, 1
        %s854 = scalar_select %p853, %s43, 1
        %s855 = smul.addr %s854, 4
        %s856 = smul.addr %s855, 4
        %s857 = scalar_lea.vmem %s6, %s856
        %p858 = scmp.lt.s32.totalorder %s43, 1
        %s859 = scalar_select %p858, %s43, 1
        %s860 = scalar_lea.vmem %s7, %s859
        %p861 = scmp.lt.s32.totalorder %s43, 1
        %s862 = scalar_select %p861, %s43, 1
        %s863 = smul.addr %s862, 4
        %s864 = smul.addr %s863, 4
        %s865 = scalar_lea.vmem %s8, %s864
        %p866 = scmp.lt.s32.totalorder %s43, 1
        %s867 = scalar_select %p866, %s43, 1
        %s868 = scalar_lea.vmem %s9, %s867
        %p869 = scmp.lt.s32.totalorder %s43, 1
        %s870 = scalar_select %p869, %s43, 1
        %s871 = scalar_lea.vmem %s10, %s870
        %p872 = scmp.lt.s32.totalorder %s43, 1
        %s873 = scalar_select %p872, %s43, 1
        %s874 = scalar_lea.vmem %s11, %s873
        %p875 = scmp.lt.s32.totalorder %s43, 1
        %s876 = scalar_select %p875, %s43, 1
        %s877 = smul.addr %s876, 4
        %s878 = smul.addr %s877, 4
        %s879 = scalar_lea.vmem %s12, %s878
        %p880 = scmp.lt.s32.totalorder %s43, 1
        %s881 = scalar_select %p880, %s43, 1
        %s882 = scalar_lea.vmem %s13, %s881
        %p883 = scmp.lt.s32.totalorder %s43, 1
        %s884 = scalar_select %p883, %s43, 1
        %s885 = smul.addr %s884, 16
        %s886 = smul.addr %s885, 4
        %s887 = scalar_lea.vmem %s14, %s886
        %p888 = scmp.lt.s32.totalorder %s43, 1
        %s889 = scalar_select %p888, %s43, 1
        %s890 = scalar_lea.vmem %s15, %s889
        %p891 = scmp.lt.s32.totalorder %s43, 1
        %s892 = scalar_select %p891, %s43, 1
        %s893 = scalar_lea.vmem %s16, %s892
        %p894 = scmp.lt.s32.totalorder %s43, 1
        %s895 = scalar_select %p894, %s43, 1
        %s896 = scalar_lea.vmem %s17, %s895
        %p898 = scmp.eq.s32.totalorder %s43, 0
        // Predicated region
        $region101: #{tpu_custom_call.1} parent=91 // pred_check
          %p899 = pneg %p898
        $region102: #{tpu_custom_call.1} parent=91 // pred_check_branch
          %901 = sbr.rel (%p899) target = $region104
        $region103: #{tpu_custom_call.1} parent=91 // pred_region
          %v902 = vld [vmem:[%s712] sm:$0xf]
          %vm903 = vcmask 257024
          %904 = vst.msk [vmem:[%s836] sm:$0xf] %vm903, %v902
        $region104: #{tpu_custom_call.1} parent=91 // pred_fallthru
          _
        %v905 = vld [vmem:[%s836] sm:$0xf]
        %v906 = vunpack.c.l.bf16 %v905
        %v907 = vld [vmem:[%s841] sm:$0xf]
        %v908 = vld [vmem:[%s841 + $0x4] sm:$0xf]
        %v909 = vld [vmem:[%s841 + $0x8] sm:$0xf]
        %v910 = vld [vmem:[%s841 + $0xc] sm:$0xf]
        %v911 = vld [vmem:[%s844] sm:$0x1]
        %v913 = vlaneseq
        %v914 = vshrl.u32 %v913, 7
        %v915 = vsub.s32 0, %v914
        %v916 = vrot.slane %v911, %v915
        %v922 = vunpack.c.l.b16 %v907
        %v923 = vunpack.c.l.b16 %v908
        %v924 = vunpack.c.l.b16 %v909
        %v925 = vunpack.c.l.b16 %v910
        %v926 = vpack.c.b16 %v923, %v922
        %v927 = vpack.c.b16 %v925, %v924
        %vm930 = vcmask 261120
        %v932 = vsel %vm930, %v905, 0
        %934 = vmatprep.subr.bf16.mxu0 0
        %935 = vmatpush1.bf16.msra.mxu0 0
        %936 = vmatprep.subr.bf16.mxu0 0
        %937 = vmatpush1.bf16.msra.mxu0 0
        %938 = vmatprep.subr.bf16.mxu0 0
        %939 = vmatpush1.bf16.msra.mxu0 0
        %940 = vmatprep.subr.bf16.mxu0 0
        %941 = vmatpush1.bf16.msra.mxu0 0
        %942 = vmatprep.subr.bf16.mxu0 0
        %943 = vmatpush1.bf16.msra.mxu0 0
        %944 = vmatprep.subr.bf16.mxu0 0
        %945 = vmatpush1.bf16.msra.mxu0 0
        %946 = vmatprep.subr.bf16.mxu0 0
        %947 = vmatpush1.bf16.msra.mxu0 %v927
        %948 = vmatprep.subr.bf16.mxu0 0
        %949 = vmatpush1.bf16.msra.mxu0 %v926
        %950 = vmatprep.subr.bf16.mxu0 0
        %951 = vmatpush2.bf16.msra.mxu0 0
        %952 = vmatprep.subr.bf16.mxu0 0
        %953 = vmatpush2.bf16.msra.mxu0 0
        %954 = vmatprep.subr.bf16.mxu0 0
        %955 = vmatpush2.bf16.msra.mxu0 0
        %956 = vmatprep.subr.bf16.mxu0 0
        %957 = vmatpush2.bf16.msra.mxu0 0
        %958 = vmatprep.subr.bf16.mxu0 0
        %959 = vmatpush2.bf16.msra.mxu0 0
        %960 = vmatprep.subr.bf16.mxu0 0
        %961 = vmatpush2.bf16.msra.mxu0 0
        %962 = vmatprep.subr.bf16.mxu0 0
        %963 = vmatpush2.bf16.msra.mxu0 0
        %964 = vmatprep.subr.bf16.mxu0 0
        %965 = vmatpush2.bf16.msra.mxu0 0
        %966 = vmatprep.mubr.bf16.mxu0 0
        %967 = vmatmul.mubr.bf16.gmra.mxu0 %v932
        %v968 = vpop.f32.mrf.mxu0
        %v969 = vadd.f32 %v916, %v968
        %v970 = vpop.f32.mrf.mxu0
        %v971 = vpop.f32.mrf.mxu0
        %v972 = vpop.f32.mrf.mxu0
        %973 = vdwg.mxu0
        %v974 = vld [vmem:[%s849] sm:$0xf]
        %v975 = vld [vmem:[%s849 + $0x4] sm:$0xf]
        %v976 = vld [vmem:[%s849 + $0x8] sm:$0xf]
        %v977 = vld [vmem:[%s849 + $0xc] sm:$0xf]
        %v978 = vld [vmem:[%s852] sm:$0x1]
        %v980 = vlaneseq
        %v981 = vshrl.u32 %v980, 7
        %v982 = vsub.s32 0, %v981
        %v983 = vrot.slane %v978, %v982
        %v989 = vunpack.c.l.b16 %v974
        %v990 = vunpack.c.l.b16 %v975
        %v991 = vunpack.c.l.b16 %v976
        %v992 = vunpack.c.l.b16 %v977
        %v993 = vpack.c.b16 %v990, %v989
        %v994 = vpack.c.b16 %v992, %v991
        %997 = vmatprep.subr.bf16.mxu0 0
        %998 = vmatpush1.bf16.msra.mxu0 0
        %999 = vmatprep.subr.bf16.mxu0 0
        %1000 = vmatpush1.bf16.msra.mxu0 0
        %1001 = vmatprep.subr.bf16.mxu0 0
        %1002 = vmatpush1.bf16.msra.mxu0 0
        %1003 = vmatprep.subr.bf16.mxu0 0
        %1004 = vmatpush1.bf16.msra.mxu0 0
        %1005 = vmatprep.subr.bf16.mxu0 0
        %1006 = vmatpush1.bf16.msra.mxu0 0
        %1007 = vmatprep.subr.bf16.mxu0 0
        %1008 = vmatpush1.bf16.msra.mxu0 0
        %1009 = vmatprep.subr.bf16.mxu0 0
        %1010 = vmatpush1.bf16.msra.mxu0 %v994
        %1011 = vmatprep.subr.bf16.mxu0 0
        %1012 = vmatpush1.bf16.msra.mxu0 %v993
        %1013 = vmatprep.subr.bf16.mxu0 0
        %1014 = vmatpush2.bf16.msra.mxu0 0
        %1015 = vmatprep.subr.bf16.mxu0 0
        %1016 = vmatpush2.bf16.msra.mxu0 0
        %1017 = vmatprep.subr.bf16.mxu0 0
        %1018 = vmatpush2.bf16.msra.mxu0 0
        %1019 = vmatprep.subr.bf16.mxu0 0
        %1020 = vmatpush2.bf16.msra.mxu0 0
        %1021 = vmatprep.subr.bf16.mxu0 0
        %1022 = vmatpush2.bf16.msra.mxu0 0
        %1023 = vmatprep.subr.bf16.mxu0 0
        %1024 = vmatpush2.bf16.msra.mxu0 0
        %1025 = vmatprep.subr.bf16.mxu0 0
        %1026 = vmatpush2.bf16.msra.mxu0 0
        %1027 = vmatprep.subr.bf16.mxu0 0
        %1028 = vmatpush2.bf16.msra.mxu0 0
        %1029 = vmatprep.mubr.bf16.mxu0 0
        %1030 = vmatmul.mubr.bf16.gmra.mxu0 %v932
        %v1031 = vpop.f32.mrf.mxu0
        %v1032 = vadd.f32 %v983, %v1031
        %v1033 = vpop.f32.mrf.mxu0
        %v1034 = vpop.f32.mrf.mxu0
        %v1035 = vpop.f32.mrf.mxu0
        %1036 = vdwg.mxu0
        %v1037 = vld [vmem:[%s857] sm:$0xf]
        %v1038 = vld [vmem:[%s857 + $0x4] sm:$0xf]
        %v1039 = vld [vmem:[%s857 + $0x8] sm:$0xf]
        %v1040 = vld [vmem:[%s857 + $0xc] sm:$0xf]
        %v1041 = vld [vmem:[%s860] sm:$0x1]
        %v1043 = vlaneseq
        %v1044 = vshrl.u32 %v1043, 7
        %v1045 = vsub.s32 0, %v1044
        %v1046 = vrot.slane %v1041, %v1045
        %v1052 = vunpack.c.l.b16 %v1037
        %v1053 = vunpack.c.l.b16 %v1038
        %v1054 = vunpack.c.l.b16 %v1039
        %v1055 = vunpack.c.l.b16 %v1040
        %v1056 = vpack.c.b16 %v1053, %v1052
        %v1057 = vpack.c.b16 %v1055, %v1054
        %1060 = vmatprep.subr.bf16.mxu0 0
        %1061 = vmatpush1.bf16.msra.mxu0 0
        %1062 = vmatprep.subr.bf16.mxu0 0
        %1063 = vmatpush1.bf16.msra.mxu0 0
        %1064 = vmatprep.subr.bf16.mxu0 0
        %1065 = vmatpush1.bf16.msra.mxu0 0
        %1066 = vmatprep.subr.bf16.mxu0 0
        %1067 = vmatpush1.bf16.msra.mxu0 0
        %1068 = vmatprep.subr.bf16.mxu0 0
        %1069 = vmatpush1.bf16.msra.mxu0 0
        %1070 = vmatprep.subr.bf16.mxu0 0
        %1071 = vmatpush1.bf16.msra.mxu0 0
        %1072 = vmatprep.subr.bf16.mxu0 0
        %1073 = vmatpush1.bf16.msra.mxu0 %v1057
        %1074 = vmatprep.subr.bf16.mxu0 0
        %1075 = vmatpush1.bf16.msra.mxu0 %v1056
        %1076 = vmatprep.subr.bf16.mxu0 0
        %1077 = vmatpush2.bf16.msra.mxu0 0
        %1078 = vmatprep.subr.bf16.mxu0 0
        %1079 = vmatpush2.bf16.msra.mxu0 0
        %1080 = vmatprep.subr.bf16.mxu0 0
        %1081 = vmatpush2.bf16.msra.mxu0 0
        %1082 = vmatprep.subr.bf16.mxu0 0
        %1083 = vmatpush2.bf16.msra.mxu0 0
        %1084 = vmatprep.subr.bf16.mxu0 0
        %1085 = vmatpush2.bf16.msra.mxu0 0
        %1086 = vmatprep.subr.bf16.mxu0 0
        %1087 = vmatpush2.bf16.msra.mxu0 0
        %1088 = vmatprep.subr.bf16.mxu0 0
        %1089 = vmatpush2.bf16.msra.mxu0 0
        %1090 = vmatprep.subr.bf16.mxu0 0
        %1091 = vmatpush2.bf16.msra.mxu0 0
        %1092 = vmatprep.mubr.bf16.mxu0 0
        %1093 = vmatmul.mubr.bf16.gmra.mxu0 %v932
        %v1094 = vpop.f32.mrf.mxu0
        %v1095 = vadd.f32 %v1046, %v1094
        %v1096 = vpop.f32.mrf.mxu0
        %v1097 = vpop.f32.mrf.mxu0
        %v1098 = vpop.f32.mrf.mxu0
        %1099 = vdwg.mxu0
        %v1100 = vmul.f32 %v969, 0.25
        %1102 = vrot.lane.b32.xlu0 %v1100, 112
        %v1103 = vpop.permute.xlu0 %1102
        %v1105 = vcombine.high %v1100, 0.0
        %v1107 = vunpack.c.l.s4 1983009808
        %v1108 = vunpack.c.0.s8 %v1107
        %v1109 = vlaneseq
        %v1110 = vshrl.u32 %v1109, 7
        %v1111 = vsub.s32 %v1108, %v1110
        %v1112 = vrot.slane %v1100, %v1111
        %v1114 = vunpack.c.l.s4 1983009808
        %v1115 = vunpack.c.0.s8 %v1114
        %v1116 = vlaneseq
        %v1117 = vshrl.u32 %v1116, 7
        %v1118 = vsub.s32 %v1115, %v1117
        %v1119 = vrot.slane %v1105, %v1118
        %v1120 = vcombine.high %v1103, 0.0
        %v1122 = vunpack.c.l.s4 1983009808
        %v1123 = vunpack.c.0.s8 %v1122
        %v1124 = vlaneseq
        %v1125 = vshrl.u32 %v1124, 7
        %v1126 = vsub.s32 %v1123, %v1125
        %v1127 = vrot.slane %v1103, %v1126
        %v1129 = vunpack.c.l.s4 1983009808
        %v1130 = vunpack.c.0.s8 %v1129
        %v1131 = vlaneseq
        %v1132 = vshrl.u32 %v1131, 7
        %v1133 = vsub.s32 %v1130, %v1132
        %v1134 = vrot.slane %v1120, %v1133
        %v1135 = vcombine.low %v1112, %v1127
        %v1136 = vcombine.high %v1112, %v1127
        %v1138 = vunpack.c.l.s4 1934713408
        %v1139 = vunpack.c.0.s8 %v1138
        %v1140 = vlaneseq
        %v1141 = vshrl.u32 %v1140, 7
        %v1142 = vsub.s32 %v1139, %v1141
        %v1143 = vrot.slane %v1135, %v1142
        %v1145 = vunpack.c.l.s4 1934713408
        %v1146 = vunpack.c.0.s8 %v1145
        %v1147 = vlaneseq
        %v1148 = vshrl.u32 %v1147, 7
        %v1149 = vsub.s32 %v1146, %v1148
        %v1150 = vrot.slane %v1136, %v1149
        %v1151 = vcombine.low %v1119, %v1134
        %v1152 = vcombine.high %v1119, %v1134
        %v1154 = vunpack.c.l.s4 1934713408
        %v1155 = vunpack.c.0.s8 %v1154
        %v1156 = vlaneseq
        %v1157 = vshrl.u32 %v1156, 7
        %v1158 = vsub.s32 %v1155, %v1157
        %v1159 = vrot.slane %v1151, %v1158
        %v1161 = vunpack.c.l.s4 1934713408
        %v1162 = vunpack.c.0.s8 %v1161
        %v1163 = vlaneseq
        %v1164 = vshrl.u32 %v1163, 7
        %v1165 = vsub.s32 %v1162, %v1164
        %v1166 = vrot.slane %v1152, %v1165
        %v1167 = vcombine.high %v1143, 0.0
        %v1168 = vcombine.high %v1150, 0.0
        %v1169 = vcombine.high %v1159, 0.0
        %v1170 = vcombine.high %v1166, 0.0
        %v1171 = vcombine.low %v1143, %v1150
        %v1173 = vunpack.c.l.s4 1983009808
        %v1174 = vunpack.c.0.s8 %v1173
        %v1175 = vlaneseq
        %v1176 = vshrl.u32 %v1175, 7
        %v1177 = vsub.s32 %v1174, %v1176
        %v1178 = vrot.slane %v1171, %v1177
        %v1179 = vcombine.low %v1167, %v1168
        %v1181 = vunpack.c.l.s4 1983009808
        %v1182 = vunpack.c.0.s8 %v1181
        %v1183 = vlaneseq
        %v1184 = vshrl.u32 %v1183, 7
        %v1185 = vsub.s32 %v1182, %v1184
        %v1186 = vrot.slane %v1179, %v1185
        %v1187 = vcombine.low %v1159, %v1166
        %v1189 = vunpack.c.l.s4 1983009808
        %v1190 = vunpack.c.0.s8 %v1189
        %v1191 = vlaneseq
        %v1192 = vshrl.u32 %v1191, 7
        %v1193 = vsub.s32 %v1190, %v1192
        %v1194 = vrot.slane %v1187, %v1193
        %v1195 = vcombine.low %v1169, %v1170
        %v1197 = vunpack.c.l.s4 1983009808
        %v1198 = vunpack.c.0.s8 %v1197
        %v1199 = vlaneseq
        %v1200 = vshrl.u32 %v1199, 7
        %v1201 = vsub.s32 %v1198, %v1200
        %v1202 = vrot.slane %v1195, %v1201
        %v1203 = vcombine.low %v1178, %v1186
        %v1205 = vunpack.c.l.s4 1934713408
        %v1206 = vunpack.c.0.s8 %v1205
        %v1207 = vlaneseq
        %v1208 = vshrl.u32 %v1207, 7
        %v1209 = vsub.s32 %v1206, %v1208
        %v1210 = vrot.slane %v1203, %v1209
        %v1211 = vcombine.low %v1194, %v1202
        %v1213 = vunpack.c.l.s4 1934713408
        %v1214 = vunpack.c.0.s8 %v1213
        %v1215 = vlaneseq
        %v1216 = vshrl.u32 %v1215, 7
        %v1217 = vsub.s32 %v1214, %v1216
        %v1218 = vrot.slane %v1211, %v1217
        %v1219 = vcombine.low %v1210, %v1218
        %v1220 = vcombine.high %v1210, %v1218
        %v1221 = vpack.c.bf16 %v1219, %v1219
        %v1222 = vpack.c.bf16 %v1220, %v1220
        %1224 = vrot.lane.b32.xlu0 %v1032, 112
        %v1225 = vpop.permute.xlu0 %1224
        %v1227 = vcombine.high %v1032, 0.0
        %v1229 = vunpack.c.l.s4 1983009808
        %v1230 = vunpack.c.0.s8 %v1229
        %v1231 = vlaneseq
        %v1232 = vshrl.u32 %v1231, 7
        %v1233 = vsub.s32 %v1230, %v1232
        %v1234 = vrot.slane %v1032, %v1233
        %v1236 = vunpack.c.l.s4 1983009808
        %v1237 = vunpack.c.0.s8 %v1236
        %v1238 = vlaneseq
        %v1239 = vshrl.u32 %v1238, 7
        %v1240 = vsub.s32 %v1237, %v1239
        %v1241 = vrot.slane %v1227, %v1240
        %v1242 = vcombine.high %v1225, 0.0
        %v1244 = vunpack.c.l.s4 1983009808
        %v1245 = vunpack.c.0.s8 %v1244
        %v1246 = vlaneseq
        %v1247 = vshrl.u32 %v1246, 7
        %v1248 = vsub.s32 %v1245, %v1247
        %v1249 = vrot.slane %v1225, %v1248
        %v1251 = vunpack.c.l.s4 1983009808
        %v1252 = vunpack.c.0.s8 %v1251
        %v1253 = vlaneseq
        %v1254 = vshrl.u32 %v1253, 7
        %v1255 = vsub.s32 %v1252, %v1254
        %v1256 = vrot.slane %v1242, %v1255
        %v1257 = vcombine.low %v1234, %v1249
        %v1258 = vcombine.high %v1234, %v1249
        %v1260 = vunpack.c.l.s4 1934713408
        %v1261 = vunpack.c.0.s8 %v1260
        %v1262 = vlaneseq
        %v1263 = vshrl.u32 %v1262, 7
        %v1264 = vsub.s32 %v1261, %v1263
        %v1265 = vrot.slane %v1257, %v1264
        %v1267 = vunpack.c.l.s4 1934713408
        %v1268 = vunpack.c.0.s8 %v1267
        %v1269 = vlaneseq
        %v1270 = vshrl.u32 %v1269, 7
        %v1271 = vsub.s32 %v1268, %v1270
        %v1272 = vrot.slane %v1258, %v1271
        %v1273 = vcombine.low %v1241, %v1256
        %v1274 = vcombine.high %v1241, %v1256
        %v1276 = vunpack.c.l.s4 1934713408
        %v1277 = vunpack.c.0.s8 %v1276
        %v1278 = vlaneseq
        %v1279 = vshrl.u32 %v1278, 7
        %v1280 = vsub.s32 %v1277, %v1279
        %v1281 = vrot.slane %v1273, %v1280
        %v1283 = vunpack.c.l.s4 1934713408
        %v1284 = vunpack.c.0.s8 %v1283
        %v1285 = vlaneseq
        %v1286 = vshrl.u32 %v1285, 7
        %v1287 = vsub.s32 %v1284, %v1286
        %v1288 = vrot.slane %v1274, %v1287
        %v1289 = vcombine.high %v1265, 0.0
        %v1290 = vcombine.high %v1272, 0.0
        %v1291 = vcombine.high %v1281, 0.0
        %v1292 = vcombine.high %v1288, 0.0
        %v1293 = vcombine.low %v1265, %v1272
        %v1295 = vunpack.c.l.s4 1983009808
        %v1296 = vunpack.c.0.s8 %v1295
        %v1297 = vlaneseq
        %v1298 = vshrl.u32 %v1297, 7
        %v1299 = vsub.s32 %v1296, %v1298
        %v1300 = vrot.slane %v1293, %v1299
        %v1301 = vcombine.low %v1289, %v1290
        %v1303 = vunpack.c.l.s4 1983009808
        %v1304 = vunpack.c.0.s8 %v1303
        %v1305 = vlaneseq
        %v1306 = vshrl.u32 %v1305, 7
        %v1307 = vsub.s32 %v1304, %v1306
        %v1308 = vrot.slane %v1301, %v1307
        %v1309 = vcombine.low %v1281, %v1288
        %v1311 = vunpack.c.l.s4 1983009808
        %v1312 = vunpack.c.0.s8 %v1311
        %v1313 = vlaneseq
        %v1314 = vshrl.u32 %v1313, 7
        %v1315 = vsub.s32 %v1312, %v1314
        %v1316 = vrot.slane %v1309, %v1315
        %v1317 = vcombine.low %v1291, %v1292
        %v1319 = vunpack.c.l.s4 1983009808
        %v1320 = vunpack.c.0.s8 %v1319
        %v1321 = vlaneseq
        %v1322 = vshrl.u32 %v1321, 7
        %v1323 = vsub.s32 %v1320, %v1322
        %v1324 = vrot.slane %v1317, %v1323
        %v1325 = vcombine.low %v1300, %v1308
        %v1327 = vunpack.c.l.s4 1934713408
        %v1328 = vunpack.c.0.s8 %v1327
        %v1329 = vlaneseq
        %v1330 = vshrl.u32 %v1329, 7
        %v1331 = vsub.s32 %v1328, %v1330
        %v1332 = vrot.slane %v1325, %v1331
        %v1333 = vcombine.low %v1316, %v1324
        %v1335 = vunpack.c.l.s4 1934713408
        %v1336 = vunpack.c.0.s8 %v1335
        %v1337 = vlaneseq
        %v1338 = vshrl.u32 %v1337, 7
        %v1339 = vsub.s32 %v1336, %v1338
        %v1340 = vrot.slane %v1333, %v1339
        %v1341 = vcombine.low %v1332, %v1340
        %v1342 = vcombine.high %v1332, %v1340
        %v1343 = vpack.c.bf16 %v1341, %v1341
        %v1344 = vpack.c.bf16 %v1342, %v1342
        %1346 = vrot.lane.b32.xlu0 %v1095, 112
        %v1347 = vpop.permute.xlu0 %1346
        %v1349 = vcombine.high %v1095, 0.0
        %v1351 = vunpack.c.l.s4 1983009808
        %v1352 = vunpack.c.0.s8 %v1351
        %v1353 = vlaneseq
        %v1354 = vshrl.u32 %v1353, 7
        %v1355 = vsub.s32 %v1352, %v1354
        %v1356 = vrot.slane %v1095, %v1355
        %v1358 = vunpack.c.l.s4 1983009808
        %v1359 = vunpack.c.0.s8 %v1358
        %v1360 = vlaneseq
        %v1361 = vshrl.u32 %v1360, 7
        %v1362 = vsub.s32 %v1359, %v1361
        %v1363 = vrot.slane %v1349, %v1362
        %v1364 = vcombine.high %v1347, 0.0
        %v1366 = vunpack.c.l.s4 1983009808
        %v1367 = vunpack.c.0.s8 %v1366
        %v1368 = vlaneseq
        %v1369 = vshrl.u32 %v1368, 7
        %v1370 = vsub.s32 %v1367, %v1369
        %v1371 = vrot.slane %v1347, %v1370
        %v1373 = vunpack.c.l.s4 1983009808
        %v1374 = vunpack.c.0.s8 %v1373
        %v1375 = vlaneseq
        %v1376 = vshrl.u32 %v1375, 7
        %v1377 = vsub.s32 %v1374, %v1376
        %v1378 = vrot.slane %v1364, %v1377
        %v1379 = vcombine.low %v1356, %v1371
        %v1380 = vcombine.high %v1356, %v1371
        %v1382 = vunpack.c.l.s4 1934713408
        %v1383 = vunpack.c.0.s8 %v1382
        %v1384 = vlaneseq
        %v1385 = vshrl.u32 %v1384, 7
        %v1386 = vsub.s32 %v1383, %v1385
        %v1387 = vrot.slane %v1379, %v1386
        %v1389 = vunpack.c.l.s4 1934713408
        %v1390 = vunpack.c.0.s8 %v1389
        %v1391 = vlaneseq
        %v1392 = vshrl.u32 %v1391, 7
        %v1393 = vsub.s32 %v1390, %v1392
        %v1394 = vrot.slane %v1380, %v1393
        %v1395 = vcombine.low %v1363, %v1378
        %v1396 = vcombine.high %v1363, %v1378
        %v1398 = vunpack.c.l.s4 1934713408
        %v1399 = vunpack.c.0.s8 %v1398
        %v1400 = vlaneseq
        %v1401 = vshrl.u32 %v1400, 7
        %v1402 = vsub.s32 %v1399, %v1401
        %v1403 = vrot.slane %v1395, %v1402
        %v1405 = vunpack.c.l.s4 1934713408
        %v1406 = vunpack.c.0.s8 %v1405
        %v1407 = vlaneseq
        %v1408 = vshrl.u32 %v1407, 7
        %v1409 = vsub.s32 %v1406, %v1408
        %v1410 = vrot.slane %v1396, %v1409
        %v1411 = vcombine.high %v1387, 0.0
        %v1412 = vcombine.high %v1394, 0.0
        %v1413 = vcombine.high %v1403, 0.0
        %v1414 = vcombine.high %v1410, 0.0
        %v1415 = vcombine.low %v1387, %v1394
        %v1417 = vunpack.c.l.s4 1983009808
        %v1418 = vunpack.c.0.s8 %v1417
        %v1419 = vlaneseq
        %v1420 = vshrl.u32 %v1419, 7
        %v1421 = vsub.s32 %v1418, %v1420
        %v1422 = vrot.slane %v1415, %v1421
        %v1423 = vcombine.low %v1411, %v1412
        %v1425 = vunpack.c.l.s4 1983009808
        %v1426 = vunpack.c.0.s8 %v1425
        %v1427 = vlaneseq
        %v1428 = vshrl.u32 %v1427, 7
        %v1429 = vsub.s32 %v1426, %v1428
        %v1430 = vrot.slane %v1423, %v1429
        %v1431 = vcombine.low %v1403, %v1410
        %v1433 = vunpack.c.l.s4 1983009808
        %v1434 = vunpack.c.0.s8 %v1433
        %v1435 = vlaneseq
        %v1436 = vshrl.u32 %v1435, 7
        %v1437 = vsub.s32 %v1434, %v1436
        %v1438 = vrot.slane %v1431, %v1437
        %v1439 = vcombine.low %v1413, %v1414
        %v1441 = vunpack.c.l.s4 1983009808
        %v1442 = vunpack.c.0.s8 %v1441
        %v1443 = vlaneseq
        %v1444 = vshrl.u32 %v1443, 7
        %v1445 = vsub.s32 %v1442, %v1444
        %v1446 = vrot.slane %v1439, %v1445
        %v1447 = vcombine.low %v1422, %v1430
        %v1449 = vunpack.c.l.s4 1934713408
        %v1450 = vunpack.c.0.s8 %v1449
        %v1451 = vlaneseq
        %v1452 = vshrl.u32 %v1451, 7
        %v1453 = vsub.s32 %v1450, %v1452
        %v1454 = vrot.slane %v1447, %v1453
        %v1455 = vcombine.low %v1438, %v1446
        %v1457 = vunpack.c.l.s4 1934713408
        %v1458 = vunpack.c.0.s8 %v1457
        %v1459 = vlaneseq
        %v1460 = vshrl.u32 %v1459, 7
        %v1461 = vsub.s32 %v1458, %v1460
        %v1462 = vrot.slane %v1455, %v1461
        %v1463 = vcombine.low %v1454, %v1462
        %v1464 = vcombine.high %v1454, %v1462
        %v1465 = vpack.c.bf16 %v1463, %v1463
        %v1466 = vpack.c.bf16 %v1464, %v1464
        %v1467 = vld [vmem:[%s720] sm:$0x1]
        %v1469 = vlaneseq
        %v1470 = vshrl.u32 %v1469, 7
        %v1471 = vsub.s32 0, %v1470
        %v1472 = vrot.slane %v1467, %v1471
        %vm1474 = vcmask 130048
        %v1476 = vsel %vm1474, %v1221, 0
        %v1479 = vsel %vm1474, %v1343, 0
        %1481 = vmatprep.subr.bf16.mxu0 0
        %1482 = vmatpush1.bf16.xpose.msra.mxu0 0
        %1483 = vmatprep.subr.bf16.mxu0 0
        %1484 = vmatpush1.bf16.xpose.msra.mxu0 0
        %1485 = vmatprep.subr.bf16.mxu0 0
        %1486 = vmatpush1.bf16.xpose.msra.mxu0 0
        %1487 = vmatprep.subr.bf16.mxu0 0
        %1488 = vmatpush1.bf16.xpose.msra.mxu0 0
        %1489 = vmatprep.subr.bf16.mxu0 0
        %1490 = vmatpush1.bf16.xpose.msra.mxu0 0
        %1491 = vmatprep.subr.bf16.mxu0 0
        %1492 = vmatpush1.bf16.xpose.msra.mxu0 0
        %1493 = vmatprep.subr.bf16.mxu0 0
        %1494 = vmatpush1.bf16.xpose.msra.mxu0 0
        %1495 = vmatprep.subr.bf16.mxu0 0
        %1496 = vmatpush1.bf16.xpose.msra.mxu0 %v1479
        %1497 = vmatprep.subr.bf16.mxu0 0
        %1498 = vmatpush2.bf16.xpose.msra.mxu0 0
        %1499 = vmatprep.subr.bf16.mxu0 0
        %1500 = vmatpush2.bf16.xpose.msra.mxu0 0
        %1501 = vmatprep.subr.bf16.mxu0 0
        %1502 = vmatpush2.bf16.xpose.msra.mxu0 0
        %1503 = vmatprep.subr.bf16.mxu0 0
        %1504 = vmatpush2.bf16.xpose.msra.mxu0 0
        %1505 = vmatprep.subr.bf16.mxu0 0
        %1506 = vmatpush2.bf16.xpose.msra.mxu0 0
        %1507 = vmatprep.subr.bf16.mxu0 0
        %1508 = vmatpush2.bf16.xpose.msra.mxu0 0
        %1509 = vmatprep.subr.bf16.mxu0 0
        %1510 = vmatpush2.bf16.xpose.msra.mxu0 0
        %1511 = vmatprep.subr.bf16.mxu0 0
        %1512 = vmatpush2.bf16.xpose.msra.mxu0 0
        %1513 = vmatprep.mubr.bf16.mxu0 0
        %1514 = vmatmul.mubr.bf16.gmra.mxu0 %v1476
        %v1515 = vpop.f32.mrf.mxu0
        %v1516 = vadd.f32 %v1472, %v1515
        %v1517 = vpop.f32.mrf.mxu0
        %v1518 = vpop.f32.mrf.mxu0
        %v1519 = vpop.f32.mrf.mxu0
        %1520 = vdwg.mxu0
        %v1522 = vsel %vm1474, %v1222, 0
        %v1525 = vsel %vm1474, %v1344, 0
        %1527 = vmatprep.subr.bf16.mxu0 0
        %1528 = vmatpush1.bf16.xpose.msra.mxu0 0
        %1529 = vmatprep.subr.bf16.mxu0 0
        %1530 = vmatpush1.bf16.xpose.msra.mxu0 0
        %1531 = vmatprep.subr.bf16.mxu0 0
        %1532 = vmatpush1.bf16.xpose.msra.mxu0 0
        %1533 = vmatprep.subr.bf16.mxu0 0
        %1534 = vmatpush1.bf16.xpose.msra.mxu0 0
        %1535 = vmatprep.subr.bf16.mxu0 0
        %1536 = vmatpush1.bf16.xpose.msra.mxu0 0
        %1537 = vmatprep.subr.bf16.mxu0 0
        %1538 = vmatpush1.bf16.xpose.msra.mxu0 0
        %1539 = vmatprep.subr.bf16.mxu0 0
        %1540 = vmatpush1.bf16.xpose.msra.mxu0 0
        %1541 = vmatprep.subr.bf16.mxu0 0
        %1542 = vmatpush1.bf16.xpose.msra.mxu0 %v1525
        %1543 = vmatprep.subr.bf16.mxu0 0
        %1544 = vmatpush2.bf16.xpose.msra.mxu0 0
        %1545 = vmatprep.subr.bf16.mxu0 0
        %1546 = vmatpush2.bf16.xpose.msra.mxu0 0
        %1547 = vmatprep.subr.bf16.mxu0 0
        %1548 = vmatpush2.bf16.xpose.msra.mxu0 0
        %1549 = vmatprep.subr.bf16.mxu0 0
        %1550 = vmatpush2.bf16.xpose.msra.mxu0 0
        %1551 = vmatprep.subr.bf16.mxu0 0
        %1552 = vmatpush2.bf16.xpose.msra.mxu0 0
        %1553 = vmatprep.subr.bf16.mxu0 0
        %1554 = vmatpush2.bf16.xpose.msra.mxu0 0
        %1555 = vmatprep.subr.bf16.mxu0 0
        %1556 = vmatpush2.bf16.xpose.msra.mxu0 0
        %1557 = vmatprep.subr.bf16.mxu0 0
        %1558 = vmatpush2.bf16.xpose.msra.mxu0 0
        %1559 = vmatprep.mubr.bf16.mxu0 0
        %1560 = vmatmul.mubr.bf16.gmra.mxu0 %v1522
        %v1561 = vpop.f32.mrf.mxu0
        %v1562 = vadd.f32 %v1472, %v1561
        %v1563 = vpop.f32.mrf.mxu0
        %v1564 = vpop.f32.mrf.mxu0
        %v1565 = vpop.f32.mrf.mxu0
        %1566 = vdwg.mxu0
        %vm1567 = vcmask 31744
        %v1568 = vsel %vm1567, %v1516, -inf
        %1569 = vmax.xlane.f32.xlu0 %v1568
        %v1570 = vpop.xlane.xlu0 %1569
        %v1571 = vsel %vm1567, %v1562, -inf
        %1572 = vmax.xlane.f32.xlu0 %v1571
        %v1573 = vpop.xlane.xlu0 %1572
        %v1574 = vsub.f32 -inf, %v1570
        %v1575 = vsub.f32 -inf, %v1573
        %v1576 = vmul.f32 %v1574, 1.442695
        %v1577 = vpow.pop %v1576
        %v1578 = vmul.f32 %v1575, 1.442695
        %v1579 = vpow.pop %v1578
        %v1580 = vsub.f32 %v1516, %v1570
        %v1581 = vsub.f32 %v1562, %v1573
        %v1582 = vmul.f32 %v1580, 1.442695
        %v1583 = vpow.pop %v1582
        %v1584 = vmul.f32 %v1581, 1.442695
        %v1585 = vpow.pop %v1584
        %v1586 = vmul.f32 %v1577, 0.0
        %v1587 = vmul.f32 %v1579, 0.0
        %v1588 = vsel %vm1567, %v1583, 0.0
        %1589 = vadd.xlane.f32.xlu0 %v1588
        %v1590 = vpop.xlane.xlu0 %1589
        %v1591 = vsel %vm1567, %v1585, 0.0
        %1592 = vadd.xlane.f32.xlu0 %v1591
        %v1593 = vpop.xlane.xlu0 %1592
        %v1594 = vadd.f32 %v1586, %v1590
        %v1595 = vadd.f32 %v1587, %v1593
        %v1596 = vpack.c.bf16 %v1583, %v1583
        %v1597 = vpack.c.bf16 %v1585, %v1585
        %v1599 = vsel %vm1567, %v1596, 0
        %vm1601 = vcmask 1041408
        %v1603 = vsel %vm1601, %v1465, 0
        %1605 = vmatprep.subr.bf16.mxu0 0
        %1606 = vmatpush1.bf16.msra.mxu0 0
        %1607 = vmatprep.subr.bf16.mxu0 0
        %1608 = vmatpush1.bf16.msra.mxu0 0
        %1609 = vmatprep.subr.bf16.mxu0 0
        %1610 = vmatpush1.bf16.msra.mxu0 0
        %1611 = vmatprep.subr.bf16.mxu0 0
        %1612 = vmatpush1.bf16.msra.mxu0 0
        %1613 = vmatprep.subr.bf16.mxu0 0
        %1614 = vmatpush1.bf16.msra.mxu0 0
        %1615 = vmatprep.subr.bf16.mxu0 0
        %1616 = vmatpush1.bf16.msra.mxu0 0
        %1617 = vmatprep.subr.bf16.mxu0 0
        %1618 = vmatpush1.bf16.msra.mxu0 0
        %1619 = vmatprep.subr.bf16.mxu0 0
        %1620 = vmatpush1.bf16.msra.mxu0 %v1603
        %1621 = vmatprep.subr.bf16.mxu0 0
        %1622 = vmatpush2.bf16.msra.mxu0 0
        %1623 = vmatprep.subr.bf16.mxu0 0
        %1624 = vmatpush2.bf16.msra.mxu0 0
        %1625 = vmatprep.subr.bf16.mxu0 0
        %1626 = vmatpush2.bf16.msra.mxu0 0
        %1627 = vmatprep.subr.bf16.mxu0 0
        %1628 = vmatpush2.bf16.msra.mxu0 0
        %1629 = vmatprep.subr.bf16.mxu0 0
        %1630 = vmatpush2.bf16.msra.mxu0 0
        %1631 = vmatprep.subr.bf16.mxu0 0
        %1632 = vmatpush2.bf16.msra.mxu0 0
        %1633 = vmatprep.subr.bf16.mxu0 0
        %1634 = vmatpush2.bf16.msra.mxu0 0
        %1635 = vmatprep.subr.bf16.mxu0 0
        %1636 = vmatpush2.bf16.msra.mxu0 0
        %1637 = vmatprep.mubr.bf16.mxu0 0
        %1638 = vmatmul.mubr.bf16.gmra.mxu0 %v1599
        %v1639 = vpop.f32.mrf.mxu0
        %v1640 = vadd.f32 0.0, %v1639
        %v1641 = vpop.f32.mrf.mxu0
        %v1642 = vpop.f32.mrf.mxu0
        %v1643 = vpop.f32.mrf.mxu0
        %1644 = vdwg.mxu0
        %v1646 = vsel %vm1567, %v1597, 0
        %v1649 = vsel %vm1601, %v1466, 0
        %1651 = vmatprep.subr.bf16.mxu0 0
        %1652 = vmatpush1.bf16.msra.mxu0 0
        %1653 = vmatprep.subr.bf16.mxu0 0
        %1654 = vmatpush1.bf16.msra.mxu0 0
        %1655 = vmatprep.subr.bf16.mxu0 0
        %1656 = vmatpush1.bf16.msra.mxu0 0
        %1657 = vmatprep.subr.bf16.mxu0 0
        %1658 = vmatpush1.bf16.msra.mxu0 0
        %1659 = vmatprep.subr.bf16.mxu0 0
        %1660 = vmatpush1.bf16.msra.mxu0 0
        %1661 = vmatprep.subr.bf16.mxu0 0
        %1662 = vmatpush1.bf16.msra.mxu0 0
        %1663 = vmatprep.subr.bf16.mxu0 0
        %1664 = vmatpush1.bf16.msra.mxu0 0
        %1665 = vmatprep.subr.bf16.mxu0 0
        %1666 = vmatpush1.bf16.msra.mxu0 %v1649
        %1667 = vmatprep.subr.bf16.mxu0 0
        %1668 = vmatpush2.bf16.msra.mxu0 0
        %1669 = vmatprep.subr.bf16.mxu0 0
        %1670 = vmatpush2.bf16.msra.mxu0 0
        %1671 = vmatprep.subr.bf16.mxu0 0
        %1672 = vmatpush2.bf16.msra.mxu0 0
        %1673 = vmatprep.subr.bf16.mxu0 0
        %1674 = vmatpush2.bf16.msra.mxu0 0
        %1675 = vmatprep.subr.bf16.mxu0 0
        %1676 = vmatpush2.bf16.msra.mxu0 0
        %1677 = vmatprep.subr.bf16.mxu0 0
        %1678 = vmatpush2.bf16.msra.mxu0 0
        %1679 = vmatprep.subr.bf16.mxu0 0
        %1680 = vmatpush2.bf16.msra.mxu0 0
        %1681 = vmatprep.subr.bf16.mxu0 0
        %1682 = vmatpush2.bf16.msra.mxu0 0
        %1683 = vmatprep.mubr.bf16.mxu0 0
        %1684 = vmatmul.mubr.bf16.gmra.mxu0 %v1646
        %v1685 = vpop.f32.mrf.mxu0
        %v1686 = vadd.f32 0.0, %v1685
        %v1687 = vpop.f32.mrf.mxu0
        %v1688 = vpop.f32.mrf.mxu0
        %v1689 = vpop.f32.mrf.mxu0
        %1690 = vdwg.mxu0
        %v1691 = vadd.f32 %v1586, %v1640
        %v1692 = vadd.f32 %v1587, %v1686
        %v1694 = vrot.slane %v1343, 2
        %1695 = vrot.lane.b32.xlu0 %v1472, 124
        %v1696 = vpop.permute.xlu0 %1695
        %v1699 = vsel %vm1474, %v1694, 0
        %1701 = vmatprep.subr.bf16.mxu0 0
        %1702 = vmatpush1.bf16.xpose.msra.mxu0 0
        %1703 = vmatprep.subr.bf16.mxu0 0
        %1704 = vmatpush1.bf16.xpose.msra.mxu0 0
        %1705 = vmatprep.subr.bf16.mxu0 0
        %1706 = vmatpush1.bf16.xpose.msra.mxu0 0
        %1707 = vmatprep.subr.bf16.mxu0 0
        %1708 = vmatpush1.bf16.xpose.msra.mxu0 0
        %1709 = vmatprep.subr.bf16.mxu0 0
        %1710 = vmatpush1.bf16.xpose.msra.mxu0 0
        %1711 = vmatprep.subr.bf16.mxu0 0
        %1712 = vmatpush1.bf16.xpose.msra.mxu0 0
        %1713 = vmatprep.subr.bf16.mxu0 0
        %1714 = vmatpush1.bf16.xpose.msra.mxu0 0
        %1715 = vmatprep.subr.bf16.mxu0 0
        %1716 = vmatpush1.bf16.xpose.msra.mxu0 %v1699
        %1717 = vmatprep.subr.bf16.mxu0 0
        %1718 = vmatpush2.bf16.xpose.msra.mxu0 0
        %1719 = vmatprep.subr.bf16.mxu0 0
        %1720 = vmatpush2.bf16.xpose.msra.mxu0 0
        %1721 = vmatprep.subr.bf16.mxu0 0
        %1722 = vmatpush2.bf16.xpose.msra.mxu0 0
        %1723 = vmatprep.subr.bf16.mxu0 0
        %1724 = vmatpush2.bf16.xpose.msra.mxu0 0
        %1725 = vmatprep.subr.bf16.mxu0 0
        %1726 = vmatpush2.bf16.xpose.msra.mxu0 0
        %1727 = vmatprep.subr.bf16.mxu0 0
        %1728 = vmatpush2.bf16.xpose.msra.mxu0 0
        %1729 = vmatprep.subr.bf16.mxu0 0
        %1730 = vmatpush2.bf16.xpose.msra.mxu0 0
        %1731 = vmatprep.subr.bf16.mxu0 0
        %1732 = vmatpush2.bf16.xpose.msra.mxu0 0
        %1733 = vmatprep.mubr.bf16.mxu0 0
        %1734 = vmatmul.mubr.bf16.gmra.mxu0 %v1476
        %v1735 = vpop.f32.mrf.mxu0
        %v1736 = vadd.f32 %v1696, %v1735
        %v1737 = vpop.f32.mrf.mxu0
        %v1738 = vpop.f32.mrf.mxu0
        %v1739 = vpop.f32.mrf.mxu0
        %1740 = vdwg.mxu0
        %v1742 = vrot.slane %v1344, 2
        %v1744 = vsel %vm1474, %v1742, 0
        %1746 = vmatprep.subr.bf16.mxu0 0
        %1747 = vmatpush1.bf16.xpose.msra.mxu0 0
        %1748 = vmatprep.subr.bf16.mxu0 0
        %1749 = vmatpush1.bf16.xpose.msra.mxu0 0
        %1750 = vmatprep.subr.bf16.mxu0 0
        %1751 = vmatpush1.bf16.xpose.msra.mxu0 0
        %1752 = vmatprep.subr.bf16.mxu0 0
        %1753 = vmatpush1.bf16.xpose.msra.mxu0 0
        %1754 = vmatprep.subr.bf16.mxu0 0
        %1755 = vmatpush1.bf16.xpose.msra.mxu0 0
        %1756 = vmatprep.subr.bf16.mxu0 0
        %1757 = vmatpush1.bf16.xpose.msra.mxu0 0
        %1758 = vmatprep.subr.bf16.mxu0 0
        %1759 = vmatpush1.bf16.xpose.msra.mxu0 0
        %1760 = vmatprep.subr.bf16.mxu0 0
        %1761 = vmatpush1.bf16.xpose.msra.mxu0 %v1744
        %1762 = vmatprep.subr.bf16.mxu0 0
        %1763 = vmatpush2.bf16.xpose.msra.mxu0 0
        %1764 = vmatprep.subr.bf16.mxu0 0
        %1765 = vmatpush2.bf16.xpose.msra.mxu0 0
        %1766 = vmatprep.subr.bf16.mxu0 0
        %1767 = vmatpush2.bf16.xpose.msra.mxu0 0
        %1768 = vmatprep.subr.bf16.mxu0 0
        %1769 = vmatpush2.bf16.xpose.msra.mxu0 0
        %1770 = vmatprep.subr.bf16.mxu0 0
        %1771 = vmatpush2.bf16.xpose.msra.mxu0 0
        %1772 = vmatprep.subr.bf16.mxu0 0
        %1773 = vmatpush2.bf16.xpose.msra.mxu0 0
        %1774 = vmatprep.subr.bf16.mxu0 0
        %1775 = vmatpush2.bf16.xpose.msra.mxu0 0
        %1776 = vmatprep.subr.bf16.mxu0 0
        %1777 = vmatpush2.bf16.xpose.msra.mxu0 0
        %1778 = vmatprep.mubr.bf16.mxu0 0
        %1779 = vmatmul.mubr.bf16.gmra.mxu0 %v1522
        %v1780 = vpop.f32.mrf.mxu0
        %v1781 = vadd.f32 %v1696, %v1780
        %v1782 = vpop.f32.mrf.mxu0
        %v1783 = vpop.f32.mrf.mxu0
        %v1784 = vpop.f32.mrf.mxu0
        %1785 = vdwg.mxu0
        %v1786 = vsel %vm1567, %v1736, -inf
        %1787 = vmax.xlane.f32.xlu0 %v1786
        %v1788 = vpop.xlane.xlu0 %1787
        %v1789 = vsel %vm1567, %v1781, -inf
        %1790 = vmax.xlane.f32.xlu0 %v1789
        %v1791 = vpop.xlane.xlu0 %1790
        %v1792 = vmax.f32 %v1570, %v1788
        %v1793 = vmax.f32 %v1573, %v1791
        %v1794 = vsub.f32 %v1570, %v1792
        %v1795 = vsub.f32 %v1573, %v1793
        %v1796 = vmul.f32 %v1794, 1.442695
        %v1797 = vpow.pop %v1796
        %v1798 = vmul.f32 %v1795, 1.442695
        %v1799 = vpow.pop %v1798
        %v1800 = vsub.f32 %v1736, %v1792
        %v1801 = vsub.f32 %v1781, %v1793
        %v1802 = vmul.f32 %v1800, 1.442695
        %v1803 = vpow.pop %v1802
        %v1804 = vmul.f32 %v1801, 1.442695
        %v1805 = vpow.pop %v1804
        %v1806 = vmul.f32 %v1797, %v1594
        %v1807 = vmul.f32 %v1799, %v1595
        %v1808 = vsel %vm1567, %v1803, 0.0
        %1809 = vadd.xlane.f32.xlu0 %v1808
        %v1810 = vpop.xlane.xlu0 %1809
        %v1811 = vsel %vm1567, %v1805, 0.0
        %1812 = vadd.xlane.f32.xlu0 %v1811
        %v1813 = vpop.xlane.xlu0 %1812
        %v1814 = vadd.f32 %v1806, %v1810
        %v1815 = vadd.f32 %v1807, %v1813
        %v1816 = vmul.f32 %v1797, %v1691
        %v1817 = vmul.f32 %v1799, %v1692
        %v1818 = vpack.c.bf16 %v1803, %v1803
        %v1819 = vpack.c.bf16 %v1805, %v1805
        %v1821 = vrot.slane %v1465, 2
        %v1823 = vsel %vm1567, %v1818, 0
        %v1826 = vsel %vm1601, %v1821, 0
        %1828 = vmatprep.subr.bf16.mxu0 0
        %1829 = vmatpush1.bf16.msra.mxu0 0
        %1830 = vmatprep.subr.bf16.mxu0 0
        %1831 = vmatpush1.bf16.msra.mxu0 0
        %1832 = vmatprep.subr.bf16.mxu0 0
        %1833 = vmatpush1.bf16.msra.mxu0 0
        %1834 = vmatprep.subr.bf16.mxu0 0
        %1835 = vmatpush1.bf16.msra.mxu0 0
        %1836 = vmatprep.subr.bf16.mxu0 0
        %1837 = vmatpush1.bf16.msra.mxu0 0
        %1838 = vmatprep.subr.bf16.mxu0 0
        %1839 = vmatpush1.bf16.msra.mxu0 0
        %1840 = vmatprep.subr.bf16.mxu0 0
        %1841 = vmatpush1.bf16.msra.mxu0 0
        %1842 = vmatprep.subr.bf16.mxu0 0
        %1843 = vmatpush1.bf16.msra.mxu0 %v1826
        %1844 = vmatprep.subr.bf16.mxu0 0
        %1845 = vmatpush2.bf16.msra.mxu0 0
        %1846 = vmatprep.subr.bf16.mxu0 0
        %1847 = vmatpush2.bf16.msra.mxu0 0
        %1848 = vmatprep.subr.bf16.mxu0 0
        %1849 = vmatpush2.bf16.msra.mxu0 0
        %1850 = vmatprep.subr.bf16.mxu0 0
        %1851 = vmatpush2.bf16.msra.mxu0 0
        %1852 = vmatprep.subr.bf16.mxu0 0
        %1853 = vmatpush2.bf16.msra.mxu0 0
        %1854 = vmatprep.subr.bf16.mxu0 0
        %1855 = vmatpush2.bf16.msra.mxu0 0
        %1856 = vmatprep.subr.bf16.mxu0 0
        %1857 = vmatpush2.bf16.msra.mxu0 0
        %1858 = vmatprep.subr.bf16.mxu0 0
        %1859 = vmatpush2.bf16.msra.mxu0 0
        %1860 = vmatprep.mubr.bf16.mxu0 0
        %1861 = vmatmul.mubr.bf16.gmra.mxu0 %v1823
        %v1862 = vpop.f32.mrf.mxu0
        %v1863 = vadd.f32 0.0, %v1862
        %v1864 = vpop.f32.mrf.mxu0
        %v1865 = vpop.f32.mrf.mxu0
        %v1866 = vpop.f32.mrf.mxu0
        %1867 = vdwg.mxu0
        %v1869 = vrot.slane %v1466, 2
        %v1871 = vsel %vm1567, %v1819, 0
        %v1874 = vsel %vm1601, %v1869, 0
        %1876 = vmatprep.subr.bf16.mxu0 0
        %1877 = vmatpush1.bf16.msra.mxu0 0
        %1878 = vmatprep.subr.bf16.mxu0 0
        %1879 = vmatpush1.bf16.msra.mxu0 0
        %1880 = vmatprep.subr.bf16.mxu0 0
        %1881 = vmatpush1.bf16.msra.mxu0 0
        %1882 = vmatprep.subr.bf16.mxu0 0
        %1883 = vmatpush1.bf16.msra.mxu0 0
        %1884 = vmatprep.subr.bf16.mxu0 0
        %1885 = vmatpush1.bf16.msra.mxu0 0
        %1886 = vmatprep.subr.bf16.mxu0 0
        %1887 = vmatpush1.bf16.msra.mxu0 0
        %1888 = vmatprep.subr.bf16.mxu0 0
        %1889 = vmatpush1.bf16.msra.mxu0 0
        %1890 = vmatprep.subr.bf16.mxu0 0
        %1891 = vmatpush1.bf16.msra.mxu0 %v1874
        %1892 = vmatprep.subr.bf16.mxu0 0
        %1893 = vmatpush2.bf16.msra.mxu0 0
        %1894 = vmatprep.subr.bf16.mxu0 0
        %1895 = vmatpush2.bf16.msra.mxu0 0
        %1896 = vmatprep.subr.bf16.mxu0 0
        %1897 = vmatpush2.bf16.msra.mxu0 0
        %1898 = vmatprep.subr.bf16.mxu0 0
        %1899 = vmatpush2.bf16.msra.mxu0 0
        %1900 = vmatprep.subr.bf16.mxu0 0
        %1901 = vmatpush2.bf16.msra.mxu0 0
        %1902 = vmatprep.subr.bf16.mxu0 0
        %1903 = vmatpush2.bf16.msra.mxu0 0
        %1904 = vmatprep.subr.bf16.mxu0 0
        %1905 = vmatpush2.bf16.msra.mxu0 0
        %1906 = vmatprep.subr.bf16.mxu0 0
        %1907 = vmatpush2.bf16.msra.mxu0 0
        %1908 = vmatprep.mubr.bf16.mxu0 0
        %1909 = vmatmul.mubr.bf16.gmra.mxu0 %v1871
        %v1910 = vpop.f32.mrf.mxu0
        %v1911 = vadd.f32 0.0, %v1910
        %v1912 = vpop.f32.mrf.mxu0
        %v1913 = vpop.f32.mrf.mxu0
        %v1914 = vpop.f32.mrf.mxu0
        %1915 = vdwg.mxu0
        %v1916 = vadd.f32 %v1816, %v1863
        %v1917 = vadd.f32 %v1817, %v1911
        %v1918 = vrcp.pop %v1814
        %v1919 = vrcp.pop %v1815
        %v1920 = vmul.f32 %v1916, %v1918
        %v1921 = vmul.f32 %v1917, %v1919
        %v1922 = vcombine.high %v1920, 0.0
        %v1924 = vunpack.c.l.s4 1983009808
        %v1925 = vunpack.c.0.s8 %v1924
        %v1926 = vlaneseq
        %v1927 = vshrl.u32 %v1926, 7
        %v1928 = vsub.s32 %v1925, %v1927
        %v1929 = vrot.slane %v1920, %v1928
        %v1931 = vunpack.c.l.s4 1983009808
        %v1932 = vunpack.c.0.s8 %v1931
        %v1933 = vlaneseq
        %v1934 = vshrl.u32 %v1933, 7
        %v1935 = vsub.s32 %v1932, %v1934
        %v1936 = vrot.slane %v1922, %v1935
        %v1937 = vcombine.high %v1921, 0.0
        %v1939 = vunpack.c.l.s4 1983009808
        %v1940 = vunpack.c.0.s8 %v1939
        %v1941 = vlaneseq
        %v1942 = vshrl.u32 %v1941, 7
        %v1943 = vsub.s32 %v1940, %v1942
        %v1944 = vrot.slane %v1921, %v1943
        %v1946 = vunpack.c.l.s4 1983009808
        %v1947 = vunpack.c.0.s8 %v1946
        %v1948 = vlaneseq
        %v1949 = vshrl.u32 %v1948, 7
        %v1950 = vsub.s32 %v1947, %v1949
        %v1951 = vrot.slane %v1937, %v1950
        %v1952 = vcombine.low %v1929, %v1944
        %v1953 = vcombine.high %v1929, %v1944
        %v1955 = vunpack.c.l.s4 1934713408
        %v1956 = vunpack.c.0.s8 %v1955
        %v1957 = vlaneseq
        %v1958 = vshrl.u32 %v1957, 7
        %v1959 = vsub.s32 %v1956, %v1958
        %v1960 = vrot.slane %v1952, %v1959
        %v1962 = vunpack.c.l.s4 1934713408
        %v1963 = vunpack.c.0.s8 %v1962
        %v1964 = vlaneseq
        %v1965 = vshrl.u32 %v1964, 7
        %v1966 = vsub.s32 %v1963, %v1965
        %v1967 = vrot.slane %v1953, %v1966
        %v1968 = vcombine.low %v1936, %v1951
        %v1969 = vcombine.high %v1936, %v1951
        %v1971 = vunpack.c.l.s4 1934713408
        %v1972 = vunpack.c.0.s8 %v1971
        %v1973 = vlaneseq
        %v1974 = vshrl.u32 %v1973, 7
        %v1975 = vsub.s32 %v1972, %v1974
        %v1976 = vrot.slane %v1968, %v1975
        %v1978 = vunpack.c.l.s4 1934713408
        %v1979 = vunpack.c.0.s8 %v1978
        %v1980 = vlaneseq
        %v1981 = vshrl.u32 %v1980, 7
        %v1982 = vsub.s32 %v1979, %v1981
        %v1983 = vrot.slane %v1969, %v1982
        %v1984 = vcombine.high %v1960, 0.0
        %v1985 = vcombine.high %v1967, 0.0
        %v1986 = vcombine.high %v1976, 0.0
        %v1987 = vcombine.high %v1983, 0.0
        %v1988 = vcombine.low %v1960, %v1967
        %v1990 = vunpack.c.l.s4 1983009808
        %v1991 = vunpack.c.0.s8 %v1990
        %v1992 = vlaneseq
        %v1993 = vshrl.u32 %v1992, 7
        %v1994 = vsub.s32 %v1991, %v1993
        %v1995 = vrot.slane %v1988, %v1994
        %v1996 = vcombine.low %v1984, %v1985
        %v1998 = vunpack.c.l.s4 1983009808
        %v1999 = vunpack.c.0.s8 %v1998
        %v2000 = vlaneseq
        %v2001 = vshrl.u32 %v2000, 7
        %v2002 = vsub.s32 %v1999, %v2001
        %v2003 = vrot.slane %v1996, %v2002
        %v2004 = vcombine.low %v1976, %v1983
        %v2006 = vunpack.c.l.s4 1983009808
        %v2007 = vunpack.c.0.s8 %v2006
        %v2008 = vlaneseq
        %v2009 = vshrl.u32 %v2008, 7
        %v2010 = vsub.s32 %v2007, %v2009
        %v2011 = vrot.slane %v2004, %v2010
        %v2012 = vcombine.low %v1986, %v1987
        %v2014 = vunpack.c.l.s4 1983009808
        %v2015 = vunpack.c.0.s8 %v2014
        %v2016 = vlaneseq
        %v2017 = vshrl.u32 %v2016, 7
        %v2018 = vsub.s32 %v2015, %v2017
        %v2019 = vrot.slane %v2012, %v2018
        %v2020 = vcombine.low %v1995, %v2003
        %v2022 = vunpack.c.l.s4 1934713408
        %v2023 = vunpack.c.0.s8 %v2022
        %v2024 = vlaneseq
        %v2025 = vshrl.u32 %v2024, 7
        %v2026 = vsub.s32 %v2023, %v2025
        %v2027 = vrot.slane %v2020, %v2026
        %v2028 = vcombine.low %v2011, %v2019
        %v2030 = vunpack.c.l.s4 1934713408
        %v2031 = vunpack.c.0.s8 %v2030
        %v2032 = vlaneseq
        %v2033 = vshrl.u32 %v2032, 7
        %v2034 = vsub.s32 %v2031, %v2033
        %v2035 = vrot.slane %v2028, %v2034
        %v2036 = vcombine.low %v2027, %v2035
        %v2037 = vcombine.high %v2027, %v2035
        %2039 = vrot.lane.b32.xlu0 %v2037, 16
        %v2040 = vpop.permute.xlu0 %2039
        %v2042 = vsel %vm1474, %v2036, %v2040
        %v2043 = vpack.c.bf16 %v2042, %v2042
        %v2044 = vld [vmem:[%s865] sm:$0xf]
        %v2045 = vld [vmem:[%s865 + $0x4] sm:$0xf]
        %v2046 = vld [vmem:[%s865 + $0x8] sm:$0xf]
        %v2047 = vld [vmem:[%s865 + $0xc] sm:$0xf]
        %v2048 = vld [vmem:[%s868] sm:$0x1]
        %v2050 = vlaneseq
        %v2051 = vshrl.u32 %v2050, 7
        %v2052 = vsub.s32 0, %v2051
        %v2053 = vrot.slane %v2048, %v2052
        %v2059 = vunpack.c.l.b16 %v2044
        %v2060 = vunpack.c.l.b16 %v2045
        %v2061 = vunpack.c.l.b16 %v2046
        %v2062 = vunpack.c.l.b16 %v2047
        %v2063 = vpack.c.b16 %v2060, %v2059
        %v2064 = vpack.c.b16 %v2062, %v2061
        %v2068 = vsel %vm930, %v2043, 0
        %2070 = vmatprep.subr.bf16.mxu0 0
        %2071 = vmatpush1.bf16.msra.mxu0 0
        %2072 = vmatprep.subr.bf16.mxu0 0
        %2073 = vmatpush1.bf16.msra.mxu0 0
        %2074 = vmatprep.subr.bf16.mxu0 0
        %2075 = vmatpush1.bf16.msra.mxu0 0
        %2076 = vmatprep.subr.bf16.mxu0 0
        %2077 = vmatpush1.bf16.msra.mxu0 0
        %2078 = vmatprep.subr.bf16.mxu0 0
        %2079 = vmatpush1.bf16.msra.mxu0 0
        %2080 = vmatprep.subr.bf16.mxu0 0
        %2081 = vmatpush1.bf16.msra.mxu0 0
        %2082 = vmatprep.subr.bf16.mxu0 0
        %2083 = vmatpush1.bf16.msra.mxu0 %v2064
        %2084 = vmatprep.subr.bf16.mxu0 0
        %2085 = vmatpush1.bf16.msra.mxu0 %v2063
        %2086 = vmatprep.subr.bf16.mxu0 0
        %2087 = vmatpush2.bf16.msra.mxu0 0
        %2088 = vmatprep.subr.bf16.mxu0 0
        %2089 = vmatpush2.bf16.msra.mxu0 0
        %2090 = vmatprep.subr.bf16.mxu0 0
        %2091 = vmatpush2.bf16.msra.mxu0 0
        %2092 = vmatprep.subr.bf16.mxu0 0
        %2093 = vmatpush2.bf16.msra.mxu0 0
        %2094 = vmatprep.subr.bf16.mxu0 0
        %2095 = vmatpush2.bf16.msra.mxu0 0
        %2096 = vmatprep.subr.bf16.mxu0 0
        %2097 = vmatpush2.bf16.msra.mxu0 0
        %2098 = vmatprep.subr.bf16.mxu0 0
        %2099 = vmatpush2.bf16.msra.mxu0 0
        %2100 = vmatprep.subr.bf16.mxu0 0
        %2101 = vmatpush2.bf16.msra.mxu0 0
        %2102 = vmatprep.mubr.bf16.mxu0 0
        %2103 = vmatmul.mubr.bf16.gmra.mxu0 %v2068
        %v2104 = vpop.f32.mrf.mxu0
        %v2105 = vadd.f32 %v2053, %v2104
        %v2106 = vpop.f32.mrf.mxu0
        %v2107 = vpop.f32.mrf.mxu0
        %v2108 = vpop.f32.mrf.mxu0
        %2109 = vdwg.mxu0
        %v2110 = vadd.f32 %v906, %v2105
        %v2111 = vsel %vm930, %v2110, 0.0
        %2112 = vadd.xlane.f32.xlu0 %v2111
        %v2113 = vpop.xlane.xlu0 %2112
        %v2114 = vrcp.pop 32.0
        %v2115 = vmul.f32 %v2113, %v2114
        %v2116 = vsub.f32 %v2110, %v2115
        %v2117 = vmul.f32 %v2116, %v2116
        %v2118 = vsel %vm930, %v2117, 0.0
        %2119 = vadd.xlane.f32.xlu0 %v2118
        %v2120 = vpop.xlane.xlu0 %2119
        %v2121 = vmul.f32 %v2120, %v2114
        %v2122 = vadd.f32 %v2121, 1e-06
        %v2123 = vrsqrt.pop %v2122
        %v2124 = vmul.f32 %v2116, %v2123
        %v2125 = vld [vmem:[%s871] sm:$0x1]
        %v2127 = vlaneseq
        %v2128 = vshrl.u32 %v2127, 7
        %v2129 = vsub.s32 0, %v2128
        %v2130 = vrot.slane %v2125, %v2129
        %v2132 = vmul.f32 %v2124, %v2130
        %v2133 = vld [vmem:[%s874] sm:$0x1]
        %v2135 = vlaneseq
        %v2136 = vshrl.u32 %v2135, 7
        %v2137 = vsub.s32 0, %v2136
        %v2138 = vrot.slane %v2133, %v2137
        %v2140 = vadd.f32 %v2132, %v2138
        %v2141 = vpack.c.bf16 %v2140, %v2140
        %v2142 = vld [vmem:[%s879] sm:$0xf]
        %v2143 = vld [vmem:[%s879 + $0x4] sm:$0xf]
        %v2144 = vld [vmem:[%s879 + $0x8] sm:$0xf]
        %v2145 = vld [vmem:[%s879 + $0xc] sm:$0xf]
        %v2146 = vld [vmem:[%s882] sm:$0x1]
        %v2148 = vlaneseq
        %v2149 = vshrl.u32 %v2148, 7
        %v2150 = vsub.s32 0, %v2149
        %v2151 = vrot.slane %v2146, %v2150
        %v2157 = vunpack.c.l.b16 %v2142
        %v2158 = vunpack.c.l.b16 %v2143
        %v2159 = vunpack.c.l.b16 %v2144
        %v2160 = vunpack.c.l.b16 %v2145
        %v2161 = vpack.c.b16 %v2158, %v2157
        %v2162 = vpack.c.b16 %v2160, %v2159
        %v2166 = vsel %vm930, %v2141, 0
        %2168 = vmatprep.subr.bf16.mxu0 0
        %2169 = vmatpush1.bf16.msra.mxu0 0
        %2170 = vmatprep.subr.bf16.mxu0 0
        %2171 = vmatpush1.bf16.msra.mxu0 0
        %2172 = vmatprep.subr.bf16.mxu0 0
        %2173 = vmatpush1.bf16.msra.mxu0 0
        %2174 = vmatprep.subr.bf16.mxu0 0
        %2175 = vmatpush1.bf16.msra.mxu0 0
        %2176 = vmatprep.subr.bf16.mxu0 0
        %2177 = vmatpush1.bf16.msra.mxu0 0
        %2178 = vmatprep.subr.bf16.mxu0 0
        %2179 = vmatpush1.bf16.msra.mxu0 0
        %2180 = vmatprep.subr.bf16.mxu0 0
        %2181 = vmatpush1.bf16.msra.mxu0 %v2162
        %2182 = vmatprep.subr.bf16.mxu0 0
        %2183 = vmatpush1.bf16.msra.mxu0 %v2161
        %2184 = vmatprep.subr.bf16.mxu0 0
        %2185 = vmatpush2.bf16.msra.mxu0 0
        %2186 = vmatprep.subr.bf16.mxu0 0
        %2187 = vmatpush2.bf16.msra.mxu0 0
        %2188 = vmatprep.subr.bf16.mxu0 0
        %2189 = vmatpush2.bf16.msra.mxu0 0
        %2190 = vmatprep.subr.bf16.mxu0 0
        %2191 = vmatpush2.bf16.msra.mxu0 0
        %2192 = vmatprep.subr.bf16.mxu0 0
        %2193 = vmatpush2.bf16.msra.mxu0 0
        %2194 = vmatprep.subr.bf16.mxu0 0
        %2195 = vmatpush2.bf16.msra.mxu0 0
        %2196 = vmatprep.subr.bf16.mxu0 0
        %2197 = vmatpush2.bf16.msra.mxu0 0
        %2198 = vmatprep.subr.bf16.mxu0 0
        %2199 = vmatpush2.bf16.msra.mxu0 0
        %2200 = vmatprep.mubr.bf16.mxu0 0
        %2201 = vmatmul.mubr.bf16.gmra.mxu0 %v2166
        %v2202 = vpop.f32.mrf.mxu0
        %v2203 = vadd.f32 %v2151, %v2202
        %v2204 = vpop.f32.mrf.mxu0
        %v2205 = vpop.f32.mrf.mxu0
        %v2206 = vpop.f32.mrf.mxu0
        %2207 = vdwg.mxu0
        %v2208 = vmul.f32 %v2203, 0.5
        %v2209 = vmul.f32 %v2203, 0.044715
        %v2210 = vmul.f32 %v2209, %v2203
        %v2211 = vmul.f32 %v2210, %v2203
        %v2212 = vadd.f32 %v2203, %v2211
        %v2213 = vmul.f32 %v2212, 0.7978846
        %v2214 = vtanh.pop %v2213
        %v2215 = vadd.f32 %v2214, 1.0
        %v2216 = vmul.f32 %v2208, %v2215
        %v2217 = vpack.c.bf16 %v2216, %v2216
        %v2218 = vld [vmem:[%s887] sm:$0xf]
        %v2219 = vld [vmem:[%s887 + $0x4] sm:$0xf]
        %v2220 = vld [vmem:[%s887 + $0x8] sm:$0xf]
        %v2221 = vld [vmem:[%s887 + $0xc] sm:$0xf]
        %v2222 = vld [vmem:[%s887 + $0x10] sm:$0xf]
        %v2223 = vld [vmem:[%s887 + $0x14] sm:$0xf]
        %v2224 = vld [vmem:[%s887 + $0x18] sm:$0xf]
        %v2225 = vld [vmem:[%s887 + $0x1c] sm:$0xf]
        %v2226 = vld [vmem:[%s887 + $0x20] sm:$0xf]
        %v2227 = vld [vmem:[%s887 + $0x24] sm:$0xf]
        %v2228 = vld [vmem:[%s887 + $0x28] sm:$0xf]
        %v2229 = vld [vmem:[%s887 + $0x2c] sm:$0xf]
        %v2230 = vld [vmem:[%s887 + $0x30] sm:$0xf]
        %v2231 = vld [vmem:[%s887 + $0x34] sm:$0xf]
        %v2232 = vld [vmem:[%s887 + $0x38] sm:$0xf]
        %v2233 = vld [vmem:[%s887 + $0x3c] sm:$0xf]
        %v2234 = vld [vmem:[%s890] sm:$0x1]
        %v2236 = vlaneseq
        %v2237 = vshrl.u32 %v2236, 7
        %v2238 = vsub.s32 0, %v2237
        %v2239 = vrot.slane %v2234, %v2238
        %v2257 = vunpack.c.l.b16 %v2218
        %v2258 = vunpack.c.l.b16 %v2219
        %v2259 = vunpack.c.l.b16 %v2220
        %v2260 = vunpack.c.l.b16 %v2221
        %v2261 = vunpack.c.l.b16 %v2222
        %v2262 = vunpack.c.l.b16 %v2223
        %v2263 = vunpack.c.l.b16 %v2224
        %v2264 = vunpack.c.l.b16 %v2225
        %v2265 = vunpack.c.l.b16 %v2226
        %v2266 = vunpack.c.l.b16 %v2227
        %v2267 = vunpack.c.l.b16 %v2228
        %v2268 = vunpack.c.l.b16 %v2229
        %v2269 = vunpack.c.l.b16 %v2230
        %v2270 = vunpack.c.l.b16 %v2231
        %v2271 = vunpack.c.l.b16 %v2232
        %v2272 = vunpack.c.l.b16 %v2233
        %v2273 = vpack.c.b16 %v2258, %v2257
        %v2274 = vpack.c.b16 %v2260, %v2259
        %v2275 = vpack.c.b16 %v2262, %v2261
        %v2276 = vpack.c.b16 %v2264, %v2263
        %v2277 = vpack.c.b16 %v2266, %v2265
        %v2278 = vpack.c.b16 %v2268, %v2267
        %v2279 = vpack.c.b16 %v2270, %v2269
        %v2280 = vpack.c.b16 %v2272, %v2271
        %2289 = vmatprep.subr.bf16.mxu0 0
        %2290 = vmatpush1.bf16.msra.mxu0 %v2280
        %2291 = vmatprep.subr.bf16.mxu0 0
        %2292 = vmatpush1.bf16.msra.mxu0 %v2279
        %2293 = vmatprep.subr.bf16.mxu0 0
        %2294 = vmatpush1.bf16.msra.mxu0 %v2278
        %2295 = vmatprep.subr.bf16.mxu0 0
        %2296 = vmatpush1.bf16.msra.mxu0 %v2277
        %2297 = vmatprep.subr.bf16.mxu0 0
        %2298 = vmatpush1.bf16.msra.mxu0 %v2276
        %2299 = vmatprep.subr.bf16.mxu0 0
        %2300 = vmatpush1.bf16.msra.mxu0 %v2275
        %2301 = vmatprep.subr.bf16.mxu0 0
        %2302 = vmatpush1.bf16.msra.mxu0 %v2274
        %2303 = vmatprep.subr.bf16.mxu0 0
        %2304 = vmatpush1.bf16.msra.mxu0 %v2273
        %2305 = vmatprep.subr.bf16.mxu0 0
        %2306 = vmatpush2.bf16.msra.mxu0 0
        %2307 = vmatprep.subr.bf16.mxu0 0
        %2308 = vmatpush2.bf16.msra.mxu0 0
        %2309 = vmatprep.subr.bf16.mxu0 0
        %2310 = vmatpush2.bf16.msra.mxu0 0
        %2311 = vmatprep.subr.bf16.mxu0 0
        %2312 = vmatpush2.bf16.msra.mxu0 0
        %2313 = vmatprep.subr.bf16.mxu0 0
        %2314 = vmatpush2.bf16.msra.mxu0 0
        %2315 = vmatprep.subr.bf16.mxu0 0
        %2316 = vmatpush2.bf16.msra.mxu0 0
        %2317 = vmatprep.subr.bf16.mxu0 0
        %2318 = vmatpush2.bf16.msra.mxu0 0
        %2319 = vmatprep.subr.bf16.mxu0 0
        %2320 = vmatpush2.bf16.msra.mxu0 0
        %2321 = vmatprep.mubr.bf16.mxu0 0
        %2322 = vmatmul.mubr.bf16.gmra.mxu0 %v2217
        %v2323 = vpop.f32.mrf.mxu0
        %v2324 = vadd.f32 %v2239, %v2323
        %v2325 = vpop.f32.mrf.mxu0
        %v2326 = vpop.f32.mrf.mxu0
        %v2327 = vpop.f32.mrf.mxu0
        %2328 = vdwg.mxu0
        %v2329 = vadd.f32 %v2140, %v2324
        %v2330 = vsel %vm930, %v2329, 0.0
        %2331 = vadd.xlane.f32.xlu0 %v2330
        %v2332 = vpop.xlane.xlu0 %2331
        %v2333 = vmul.f32 %v2332, %v2114
        %v2334 = vsub.f32 %v2329, %v2333
        %v2335 = vmul.f32 %v2334, %v2334
        %v2336 = vsel %vm930, %v2335, 0.0
        %2337 = vadd.xlane.f32.xlu0 %v2336
        %v2338 = vpop.xlane.xlu0 %2337
        %v2339 = vmul.f32 %v2338, %v2114
        %v2340 = vadd.f32 %v2339, 1e-06
        %v2341 = vrsqrt.pop %v2340
        %v2342 = vmul.f32 %v2334, %v2341
        %v2343 = vld [vmem:[%s893] sm:$0x1]
        %v2345 = vlaneseq
        %v2346 = vshrl.u32 %v2345, 7
        %v2347 = vsub.s32 0, %v2346
        %v2348 = vrot.slane %v2343, %v2347
        %v2350 = vmul.f32 %v2342, %v2348
        %v2351 = vld [vmem:[%s896] sm:$0x1]
        %v2353 = vlaneseq
        %v2354 = vshrl.u32 %v2353, 7
        %v2355 = vsub.s32 0, %v2354
        %v2356 = vrot.slane %v2351, %v2355
        %v2358 = vadd.f32 %v2350, %v2356
        %v2359 = vpack.c.bf16 %v2358, %v2358
        %vm2360 = vcmask 257024
        %2361 = vst.msk [vmem:[%s836] sm:$0xf] %vm2360, %v2359
        %s2362 = sand.u32 %s526, 1
        %s2363 = scalar_lea.sflag [#allocation4], %s2362
        %s2364 = sand.u32 %s526, 1
        %s2365 = smul.addr %s2364, 4
        %s2366 = scalar_lea.vmem [#allocation7], %s2365
        // Predicated region
        $region105: #{tpu_custom_call.1} parent=91 // pred_check
          %p2367 = pneg %p536
        $region106: #{tpu_custom_call.1} parent=91 // pred_check_branch
          %2369 = sbr.rel (%p2367) target = $region108
        $region107: #{tpu_custom_call.1} parent=91 // pred_region
          %s2371 = ssub.s32 64, 64
          %2372 = vsyncadd %s2363, %s2371
          %s2373 = smul.addr %s42, 64
          %s2374 = scalar_lea.hbm %s18, %s2373
          %s2376 = sshll.u32 %s2366, 4
          %s2377 = int_to_ptr.vmem [resolvable:$true] %s2376
          %2379 = dma.vmem_to_hbm [thread:$0]  %s2377, 64, %s2374, %s2363
        $region108: #{tpu_custom_call.1} parent=91 // pred_fallthru
          _
      $region92: #{tpu_custom_call.1} parent=5 // pred_fallthru
        _
      %p2380 = scmp.le.s32.totalorder 2, %s33
      // Predicated region
      $region109: #{tpu_custom_call.1} parent=5 // pred_check
        %p2381 = pneg %p2380
      $region110: #{tpu_custom_call.1} parent=5 // pred_check_branch
        %2383 = sbr.rel (%p2381) target = $region112
      $region111: #{tpu_custom_call.1} parent=5 // pred_region
        %s2384 = ssub.s32 %s33, 2
        // Predicated region
        $region113: #{tpu_custom_call.1} parent=111 // pred_check
          %p2385 = pneg %p542
        $region114: #{tpu_custom_call.1} parent=111 // pred_check_branch
          %2387 = sbr.rel (%p2385) target = $region116
        $region115: #{tpu_custom_call.1} parent=111 // pred_region
          %s2388 = sand.u32 %s527, 1
          %s2389 = scalar_lea.sflag [#allocation4], %s2388
          %s2390 = sand.u32 %s527, 1
          %s2391 = smul.addr %s2390, 4
          %s2392 = scalar_lea.vmem [#allocation7], %s2391
          %2393 = dma.done %s2389, 64
        $region116: #{tpu_custom_call.1} parent=111 // pred_fallthru
          _
      $region112: #{tpu_custom_call.1} parent=5 // pred_fallthru
        _
    $region6: #{tpu_custom_call.1} parent=1 // loop_footer
      %s37 = sadd.s32 1, %s33
    $region7: #{tpu_custom_call.1} parent=1 // loop_footer_branch
      %32 = sbr.rel target = $region3
    $region8: #{tpu_custom_call.1} parent=1 // loop_exit
      _
    %2394 = vsyncpa [#allocation3], 1
    %s2395 = scalar_lea.sflag [#allocation3], 1
    %2396 = vsyncpa %s2395, 1
    %2397 = vsyncpa [#allocation6], 1
    %s2398 = scalar_lea.sflag [#allocation6], 1
    %2399 = vsyncpa %s2398, 1
    %2400 = vsyncpa [#allocation4], 1
    %s2401 = scalar_lea.sflag [#allocation4], 1
    %2402 = vsyncpa %s2401, 1

</llo_original>
